<compile_context>
chip_gen: v6e
topology: v6e:2x2x1
jax: 0.10.0
libtpu: 0.0.40
codegen_flags: <defaults>
</compile_context>

<pallas_src>
import functools

import jax
import jax.numpy as jnp
import numpy as np
from jax import lax
from jax.experimental import pallas as pl
from jax.experimental.pallas import tpu as pltpu

EPS = 1e-5
_TAPS = tuple((dy, dx) for dy in (-1, 0, 1) for dx in (-1, 0, 1))


# ------------------------------------------------------------------ kernel ---
def _mynet_kernel(x_ref,                      # (cinp, LW)
                  w1_ref,                     # (c1, 9*cinp)   BN-scale folded
                  w2_ref,                     # (c2, c1)
                  w3_ref,                     # (c1, 9*c2)
                  w4_ref,                     # (c2, c1)
                  b_ref,                      # (2*(c1+c2), 1) packed BN shifts
                  m_ref,                      # (9*cinp + 9*c2, LW) f32 masks
                  out_ref,                    # (c2, LW)
                  stk1_ref,                   # VMEM (9*cinp, LW) im2col stack
                  stk3_ref,                   # VMEM (9*c2,  LW) im2col stack
                  *, W, LW, cinp, c1, c2):
    def conv3x3(a, w_ref, stk_ref, m_row0, cstep):
        # a: (cstep, LW).  Build the stacked-taps matrix (9*cstep, LW) with
        # lane rolls (XLU) and a same-shape mask multiply, then one MXU matmul
        # (cout, 9*cstep) x (9*cstep, LW).
        for t, (dy, dx) in enumerate(_TAPS):
            off = dy * W + dx
            r = a if off == 0 else pltpu.roll(a, shift=(-off) % LW, axis=1)
            lo = t * cstep
            stk_ref[lo:lo + cstep, :] = r * m_ref[m_row0 + lo:m_row0 + lo + cstep, :]
        return jnp.dot(w_ref[...], stk_ref[...], preferred_element_type=jnp.float32)

    x = x_ref[...]                                                   # (cinp, LW)

    # Layer 1: 3x3 conv + folded BN + ReLU
    a1 = jnp.maximum(conv3x3(x, w1_ref, stk1_ref, 0, cinp)
                     + b_ref[0:c1, :], 0.0)                          # (c1, LW)
    # Layer 2: 1x1 conv + folded BN + ReLU
    a2 = jnp.maximum(jnp.dot(w2_ref[...], a1, preferred_element_type=jnp.float32)
                     + b_ref[c1:c1 + c2, :], 0.0)                    # (c2, LW)
    # Layer 3: 3x3 conv + folded BN + ReLU
    a3 = jnp.maximum(conv3x3(a2, w3_ref, stk3_ref, 9 * cinp, c2)
                     + b_ref[c1 + c2:2 * c1 + c2, :], 0.0)           # (c1, LW)
    # Layer 4: 1x1 conv + folded BN (no ReLU)
    out_ref[...] = (jnp.dot(w4_ref[...], a3, preferred_element_type=jnp.float32)
                    + b_ref[2 * c1 + c2:2 * (c1 + c2), :])           # (c2, LW)


# -------------------------------------------------------------- host prep ----
def _fold_scale_shift(bias, gamma, beta, mean, var):
    """Eval-mode BN folded into a per-channel (scale, shift)."""
    scale = (gamma / jnp.sqrt(var + EPS)).astype(jnp.float32)
    shift = ((bias - mean) * scale + beta).astype(jnp.float32)
    return scale, shift


def _flatten_3x3(w, scale, cin_pad):
    """(O, I, 3, 3) OIHW conv weight -> (O, 9*cin_pad), BN scale folded.

    Column order is (tap=ky*3+kx, padded-in-channel), matching the im2col
    stack built in the kernel."""
    O, I = w.shape[0], w.shape[1]
    wf = jnp.transpose(w.astype(jnp.float32), (0, 2, 3, 1))          # (O,3,3,I)
    if cin_pad > I:
        wf = jnp.pad(wf, ((0, 0), (0, 0), (0, 0), (0, cin_pad - I)))
    wf = wf.reshape(O, 9 * cin_pad) * scale[:, None]
    return wf.astype(jnp.float32)


def _boundary_masks(H, W):
    """(9, H*W) f32 validity masks for the 3x3 taps (conv padding=1)."""
    yy, xx = np.divmod(np.arange(H * W), W)
    rows = []
    for dy, dx in _TAPS:
        v = np.ones(H * W, dtype=bool)
        if dy > 0:
            v &= yy < H - dy
        if dy < 0:
            v &= yy >= -dy
        if dx > 0:
            v &= xx < W - dx
        if dx < 0:
            v &= xx >= -dx
        rows.append(v)
    return np.stack(rows).astype(np.float32)


def _tensorcores_per_chip():
    try:
        kind = jax.devices()[0].device_kind.lower()
    except Exception:
        return 1
    # v7x exposes 2 TensorCores per chip; v5e/v6e expose 1.
    return 2 if "7" in kind else 1


def build_mynet_forward(params, *, inp_dim, c1, c2, H, W, N):
    """Fold BN, flatten weights and build masks ONCE; return a jitted forward."""
    HW = H * W
    cinp = ((inp_dim + 7) // 8) * 8            # pad in-channels to sublane mult.

    # Batch blocking: keep batch on a parallel grid on multi-TC chips (v7x),
    # merge the whole batch into the lane axis on single-TC chips (v5e/v6e).
    cores = _tensorcores_per_chip()
    if cores > 1 and N % cores == 0:
        B = N // cores
    else:
        B = N
    if B * HW > 4096:                          # keep lane width / scratch modest
        B = 1
    LW = B * HW

    # ---- fold BN into conv weights + per-channel shifts (once, host side) ----
    s1, sh1 = _fold_scale_shift(params["b1"], params["g1"], params["be1"], params["m1"], params["v1"])
    s2, sh2 = _fold_scale_shift(params["b2"], params["g2"], params["be2"], params["m2"], params["v2"])
    s3, sh3 = _fold_scale_shift(params["b3"], params["g3"], params["be3"], params["m3"], params["v3"])
    s4, sh4 = _fold_scale_shift(params["b4"], params["g4"], params["be4"], params["m4"], params["v4"])

    w1f = _flatten_3x3(params["w1"], s1, cinp)                        # (c1, 9*cinp)
    w3f = _flatten_3x3(params["w3"], s3, c2)                          # (c1, 9*c2)
    w2f = (params["w2"][:, :, 0, 0].astype(jnp.float32) * s2[:, None])  # (c2, c1)
    w4f = (params["w4"][:, :, 0, 0].astype(jnp.float32) * s4[:, None])  # (c2, c1)

    bpack = jnp.concatenate([sh1, sh2, sh3, sh4])[:, None]            # (2*(c1+c2),1)

    m9 = _boundary_masks(H, W)                                        # (9, HW)
    mask_np = np.concatenate([np.repeat(m9, cinp, axis=0),
                              np.repeat(m9, c2, axis=0)], axis=0)     # (9cinp+9c2, HW)
    mask = jnp.asarray(np.tile(mask_np, (1, B)))                      # (..., LW)

    kernel = functools.partial(_mynet_kernel, W=W, LW=LW, cinp=cinp, c1=c1, c2=c2)

    def full2d(a):
        return pl.BlockSpec(a.shape, lambda i: (0, 0))

    call = pl.pallas_call(
        kernel,
        out_shape=jax.ShapeDtypeStruct((c2, N * HW), jnp.float32),
        grid_spec=pltpu.PrefetchScalarGridSpec(
            num_scalar_prefetch=0,
            grid=(N // B,),
            in_specs=[
                pl.BlockSpec((cinp, LW), lambda i: (0, i)),
                full2d(w1f), full2d(w2f), full2d(w3f), full2d(w4f),
                full2d(bpack), full2d(mask),
            ],
            out_specs=pl.BlockSpec((c2, LW), lambda i: (0, i)),
            scratch_shapes=[pltpu.VMEM((9 * cinp, LW), jnp.float32),
                            pltpu.VMEM((9 * c2, LW), jnp.float32)],
        ),
        compiler_params=pltpu.CompilerParams(
            dimension_semantics=("parallel",)),
    )

    @jax.jit
    def forward(x_nchw):
        x = x_nchw.astype(jnp.float32).reshape(N, inp_dim, HW)
        x = jnp.transpose(x, (1, 0, 2)).reshape(inp_dim, N * HW)      # (Cin, N*HW)
        x = jnp.pad(x, ((0, cinp - inp_dim), (0, 0)))                 # channel pad
        out = call(x, w1f, w2f, w3f, w4f, bpack, mask)                # (c2, N*HW)
        return jnp.transpose(out.reshape(c2, N, H, W), (1, 0, 2, 3))  # NCHW

    return forward


# ---------------------------------------------------------------- reference ---
def _ref_forward(x, p):
    def conv(x, w, b, pad):
        y = lax.conv_general_dilated(
            x, w, window_strides=(1, 1), padding=[(pad, pad), (pad, pad)],
            dimension_numbers=("NCHW", "OIHW", "NCHW"))
        return y + b[None, :, None, None]

    def bn(x, g, be, m, v):
        return ((x - m[None, :, None, None])
                / jnp.sqrt(v[None, :, None, None] + EPS)
                * g[None, :, None, None] + be[None, :, None, None])

    y = jax.nn.relu(bn(conv(x, p["w1"], p["b1"], 1), p["g1"], p["be1"], p["m1"], p["v1"]))
    y = jax.nn.relu(bn(conv(y, p["w2"], p["b2"], 0), p["g2"], p["be2"], p["m2"], p["v2"]))
    y = jax.nn.relu(bn(conv(y, p["w3"], p["b3"], 1), p["g3"], p["be3"], p["m3"], p["v3"]))
    y = bn(conv(y, p["w4"], p["b4"], 0), p["g4"], p["be4"], p["m4"], p["v4"])
    return y


def _make_params(key, inp_dim, c1, c2):
    ks = jax.random.split(key, 32)
    it = iter(range(32))
    nrm = lambda shape: 0.1 * jax.random.normal(ks[next(it)], shape, jnp.float32)
    pos = lambda shape: jax.random.uniform(ks[next(it)], shape, jnp.float32, 0.5, 1.5)
    p = {}
    # conv1 3x3 (inp_dim -> c1), bn1
    p["w1"], p["b1"] = nrm((c1, inp_dim, 3, 3)), nrm((c1,))
    p["g1"], p["be1"], p["m1"], p["v1"] = pos((c1,)), nrm((c1,)), nrm((c1,)), pos((c1,))
    # conv2 1x1 (c1 -> c2), bn2
    p["w2"], p["b2"] = nrm((c2, c1, 1, 1)), nrm((c2,))
    p["g2"], p["be2"], p["m2"], p["v2"] = pos((c2,)), nrm((c2,)), nrm((c2,)), pos((c2,))
    # conv3 3x3 (c2 -> c1), bn3
    p["w3"], p["b3"] = nrm((c1, c2, 3, 3)), nrm((c1,))
    p["g3"], p["be3"], p["m3"], p["v3"] = pos((c1,)), nrm((c1,)), nrm((c1,)), pos((c1,))
    # conv4 1x1 (c1 -> c2), bn4
    p["w4"], p["b4"] = nrm((c2, c1, 1, 1)), nrm((c2,))
    p["g4"], p["be4"], p["m4"], p["v4"] = pos((c2,)), nrm((c2,)), nrm((c2,)), pos((c2,))
    return p


if __name__ == "__main__":
    N, INP_DIM, MOD_DIM1, MOD_DIM2, H, W = 2, 4, 32, 16, 16, 16

    key = jax.random.PRNGKey(0)
    kx, kp = jax.random.split(key)
    x = jax.random.normal(kx, (N, INP_DIM, H, W), jnp.float32)
    params = _make_params(kp, INP_DIM, MOD_DIM1, MOD_DIM2)

    forward = build_mynet_forward(params, inp_dim=INP_DIM, c1=MOD_DIM1,
                                  c2=MOD_DIM2, H=H, W=W, N=N)

    out = jax.block_until_ready(forward(x))
    ref = jax.block_until_ready(_ref_forward(x, params))

    assert out.shape == (N, MOD_DIM2, H, W), out.shape
    np.testing.assert_allclose(np.asarray(out), np.asarray(ref), rtol=1e-4, atol=1e-4)
    print("KERNEL_OK")
</pallas_src>

<mosaic_0001>
module attributes {stable_mosaic.version = 11 : i64} {
  func.func @_mynet_kernel(%arg0: i32, %arg1: memref<8x512xf32, #tpu.memory_space<vmem>>, %arg2: memref<32x72xf32, #tpu.memory_space<vmem>>, %arg3: memref<16x32xf32, #tpu.memory_space<vmem>>, %arg4: memref<32x144xf32, #tpu.memory_space<vmem>>, %arg5: memref<16x32xf32, #tpu.memory_space<vmem>>, %arg6: memref<96x1xf32, #tpu.memory_space<vmem>>, %arg7: memref<216x512xf32, #tpu.memory_space<vmem>>, %arg8: memref<16x512xf32, #tpu.memory_space<vmem>>, %arg9: memref<72x512xf32, #tpu.memory_space<vmem>>, %arg10: memref<144x512xf32, #tpu.memory_space<vmem>>) attributes {dimension_semantics = [#tpu.dimension_semantics<parallel>], iteration_bounds = array<i64: 1>, scalar_prefetch = 0 : i64, scratch_operands = 2 : i64, tpu.core_type = #tpu.core_type<tc>, window_params = [{transform_indices = @transform_0, window_bounds = array<i64: 8, 512>}, {pipeline_mode = #tpu.pipeline_mode<synchronous>, transform_indices = @transform_1, window_bounds = array<i64: 32, 72>}, {pipeline_mode = #tpu.pipeline_mode<synchronous>, transform_indices = @transform_2, window_bounds = array<i64: 16, 32>}, {pipeline_mode = #tpu.pipeline_mode<synchronous>, transform_indices = @transform_3, window_bounds = array<i64: 32, 144>}, {pipeline_mode = #tpu.pipeline_mode<synchronous>, transform_indices = @transform_4, window_bounds = array<i64: 16, 32>}, {pipeline_mode = #tpu.pipeline_mode<synchronous>, transform_indices = @transform_5, window_bounds = array<i64: 96, 1>}, {pipeline_mode = #tpu.pipeline_mode<synchronous>, transform_indices = @transform_6, window_bounds = array<i64: 216, 512>}, {transform_indices = @transform_7, window_bounds = array<i64: 16, 512>}]} {
    %c0 = arith.constant 0 : index
    %c0_0 = arith.constant 0 : index
    %0 = vector.load %arg1[%c0, %c0_0] : memref<8x512xf32, #tpu.memory_space<vmem>>, vector<8x512xf32>
    %c17_i32 = arith.constant 17 : i32
    %1 = tpu.dynamic_rotate %0 by %c17_i32 dim 1 : vector<8x512xf32>, i32 -> vector<8x512xf32>
    %c0_1 = arith.constant 0 : index
    %c0_2 = arith.constant 0 : index
    %2 = vector.load %arg7[%c0_1, %c0_2] : memref<216x512xf32, #tpu.memory_space<vmem>>, vector<8x512xf32>
    %3 = arith.mulf %1, %2 : vector<8x512xf32>
    %c0_3 = arith.constant 0 : index
    %c0_4 = arith.constant 0 : index
    %4 = vector.load %arg9[%c0_3, %c0_4] : memref<72x512xf32, #tpu.memory_space<vmem>>, vector<8x512xf32>
    tpu.vector_store %arg9[%c0_3, %c0_4], %3 {strides = array<i32>} : memref<72x512xf32, #tpu.memory_space<vmem>>, vector<8x512xf32>,
    %c16_i32 = arith.constant 16 : i32
    %5 = tpu.dynamic_rotate %0 by %c16_i32 dim 1 : vector<8x512xf32>, i32 -> vector<8x512xf32>
    %c8 = arith.constant 8 : index
    %c0_5 = arith.constant 0 : index
    %6 = vector.load %arg7[%c8, %c0_5] : memref<216x512xf32, #tpu.memory_space<vmem>>, vector<8x512xf32>
    %7 = arith.mulf %5, %6 : vector<8x512xf32>
    %c8_6 = arith.constant 8 : index
    %c0_7 = arith.constant 0 : index
    %8 = vector.load %arg9[%c8_6, %c0_7] : memref<72x512xf32, #tpu.memory_space<vmem>>, vector<8x512xf32>
    tpu.vector_store %arg9[%c8_6, %c0_7], %7 {strides = array<i32>} : memref<72x512xf32, #tpu.memory_space<vmem>>, vector<8x512xf32>,
    %c15_i32 = arith.constant 15 : i32
    %9 = tpu.dynamic_rotate %0 by %c15_i32 dim 1 : vector<8x512xf32>, i32 -> vector<8x512xf32>
    %c16 = arith.constant 16 : index
    %c0_8 = arith.constant 0 : index
    %10 = vector.load %arg7[%c16, %c0_8] : memref<216x512xf32, #tpu.memory_space<vmem>>, vector<8x512xf32>
    %11 = arith.mulf %9, %10 : vector<8x512xf32>
    %c16_9 = arith.constant 16 : index
    %c0_10 = arith.constant 0 : index
    %12 = vector.load %arg9[%c16_9, %c0_10] : memref<72x512xf32, #tpu.memory_space<vmem>>, vector<8x512xf32>
    tpu.vector_store %arg9[%c16_9, %c0_10], %11 {strides = array<i32>} : memref<72x512xf32, #tpu.memory_space<vmem>>, vector<8x512xf32>,
    %c1_i32 = arith.constant 1 : i32
    %13 = tpu.dynamic_rotate %0 by %c1_i32 dim 1 : vector<8x512xf32>, i32 -> vector<8x512xf32>
    %c24 = arith.constant 24 : index
    %c0_11 = arith.constant 0 : index
    %14 = vector.load %arg7[%c24, %c0_11] : memref<216x512xf32, #tpu.memory_space<vmem>>, vector<8x512xf32>
    %15 = arith.mulf %13, %14 : vector<8x512xf32>
    %c24_12 = arith.constant 24 : index
    %c0_13 = arith.constant 0 : index
    %16 = vector.load %arg9[%c24_12, %c0_13] : memref<72x512xf32, #tpu.memory_space<vmem>>, vector<8x512xf32>
    tpu.vector_store %arg9[%c24_12, %c0_13], %15 {strides = array<i32>} : memref<72x512xf32, #tpu.memory_space<vmem>>, vector<8x512xf32>,
    %c32 = arith.constant 32 : index
    %c0_14 = arith.constant 0 : index
    %17 = vector.load %arg7[%c32, %c0_14] : memref<216x512xf32, #tpu.memory_space<vmem>>, vector<8x512xf32>
    %18 = arith.mulf %0, %17 : vector<8x512xf32>
    %c32_15 = arith.constant 32 : index
    %c0_16 = arith.constant 0 : index
    %19 = vector.load %arg9[%c32_15, %c0_16] : memref<72x512xf32, #tpu.memory_space<vmem>>, vector<8x512xf32>
    tpu.vector_store %arg9[%c32_15, %c0_16], %18 {strides = array<i32>} : memref<72x512xf32, #tpu.memory_space<vmem>>, vector<8x512xf32>,
    %c511_i32 = arith.constant 511 : i32
    %20 = tpu.dynamic_rotate %0 by %c511_i32 dim 1 : vector<8x512xf32>, i32 -> vector<8x512xf32>
    %c40 = arith.constant 40 : index
    %c0_17 = arith.constant 0 : index
    %21 = vector.load %arg7[%c40, %c0_17] : memref<216x512xf32, #tpu.memory_space<vmem>>, vector<8x512xf32>
    %22 = arith.mulf %20, %21 : vector<8x512xf32>
    %c40_18 = arith.constant 40 : index
    %c0_19 = arith.constant 0 : index
    %23 = vector.load %arg9[%c40_18, %c0_19] : memref<72x512xf32, #tpu.memory_space<vmem>>, vector<8x512xf32>
    tpu.vector_store %arg9[%c40_18, %c0_19], %22 {strides = array<i32>} : memref<72x512xf32, #tpu.memory_space<vmem>>, vector<8x512xf32>,
    %c497_i32 = arith.constant 497 : i32
    %24 = tpu.dynamic_rotate %0 by %c497_i32 dim 1 : vector<8x512xf32>, i32 -> vector<8x512xf32>
    %c48 = arith.constant 48 : index
    %c0_20 = arith.constant 0 : index
    %25 = vector.load %arg7[%c48, %c0_20] : memref<216x512xf32, #tpu.memory_space<vmem>>, vector<8x512xf32>
    %26 = arith.mulf %24, %25 : vector<8x512xf32>
    %c48_21 = arith.constant 48 : index
    %c0_22 = arith.constant 0 : index
    %27 = vector.load %arg9[%c48_21, %c0_22] : memref<72x512xf32, #tpu.memory_space<vmem>>, vector<8x512xf32>
    tpu.vector_store %arg9[%c48_21, %c0_22], %26 {strides = array<i32>} : memref<72x512xf32, #tpu.memory_space<vmem>>, vector<8x512xf32>,
    %c496_i32 = arith.constant 496 : i32
    %28 = tpu.dynamic_rotate %0 by %c496_i32 dim 1 : vector<8x512xf32>, i32 -> vector<8x512xf32>
    %c56 = arith.constant 56 : index
    %c0_23 = arith.constant 0 : index
    %29 = vector.load %arg7[%c56, %c0_23] : memref<216x512xf32, #tpu.memory_space<vmem>>, vector<8x512xf32>
    %30 = arith.mulf %28, %29 : vector<8x512xf32>
    %c56_24 = arith.constant 56 : index
    %c0_25 = arith.constant 0 : index
    %31 = vector.load %arg9[%c56_24, %c0_25] : memref<72x512xf32, #tpu.memory_space<vmem>>, vector<8x512xf32>
    tpu.vector_store %arg9[%c56_24, %c0_25], %30 {strides = array<i32>} : memref<72x512xf32, #tpu.memory_space<vmem>>, vector<8x512xf32>,
    %c495_i32 = arith.constant 495 : i32
    %32 = tpu.dynamic_rotate %0 by %c495_i32 dim 1 : vector<8x512xf32>, i32 -> vector<8x512xf32>
    %c64 = arith.constant 64 : index
    %c0_26 = arith.constant 0 : index
    %33 = vector.load %arg7[%c64, %c0_26] : memref<216x512xf32, #tpu.memory_space<vmem>>, vector<8x512xf32>
    %34 = arith.mulf %32, %33 : vector<8x512xf32>
    %c64_27 = arith.constant 64 : index
    %c0_28 = arith.constant 0 : index
    %35 = vector.load %arg9[%c64_27, %c0_28] : memref<72x512xf32, #tpu.memory_space<vmem>>, vector<8x512xf32>
    tpu.vector_store %arg9[%c64_27, %c0_28], %34 {strides = array<i32>} : memref<72x512xf32, #tpu.memory_space<vmem>>, vector<8x512xf32>,
    %c0_29 = arith.constant 0 : index
    %c0_30 = arith.constant 0 : index
    %36 = vector.load %arg2[%c0_29, %c0_30] : memref<32x72xf32, #tpu.memory_space<vmem>>, vector<32x72xf32>
    %c0_31 = arith.constant 0 : index
    %c0_32 = arith.constant 0 : index
    %37 = vector.load %arg9[%c0_31, %c0_32] : memref<72x512xf32, #tpu.memory_space<vmem>>, vector<72x512xf32>
    %cst = arith.constant dense<0.000000e+00> : vector<32x512xf32>
    %38 = tpu.matmul %36, %37, %cst {dimension_numbers = #tpu.dot_dimension_numbers<[1], [0], [0], [1], [0, 0, 1, 1], [], []>} : vector<32x72xf32>, vector<72x512xf32>, vector<32x512xf32> -> vector<32x512xf32>
    %c0_33 = arith.constant 0 : index
    %c0_34 = arith.constant 0 : index
    %39 = vector.load %arg6[%c0_33, %c0_34] : memref<96x1xf32, #tpu.memory_space<vmem>>, vector<32x1xf32>
    %40 = vector.broadcast %39 : vector<32x1xf32> to vector<32x512xf32>
    %41 = arith.addf %38, %40 : vector<32x512xf32>
    %cst_35 = arith.constant 0.000000e+00 : f32
    %42 = vector.broadcast %cst_35 : f32 to vector<32x512xf32>
    %43 = arith.maximumf %41, %42 : vector<32x512xf32>
    %c0_36 = arith.constant 0 : index
    %c0_37 = arith.constant 0 : index
    %44 = vector.load %arg3[%c0_36, %c0_37] : memref<16x32xf32, #tpu.memory_space<vmem>>, vector<16x32xf32>
    %cst_38 = arith.constant dense<0.000000e+00> : vector<16x512xf32>
    %45 = tpu.matmul %44, %43, %cst_38 {dimension_numbers = #tpu.dot_dimension_numbers<[1], [0], [0], [1], [0, 0, 1, 1], [], []>} : vector<16x32xf32>, vector<32x512xf32>, vector<16x512xf32> -> vector<16x512xf32>
    %c32_39 = arith.constant 32 : index
    %c0_40 = arith.constant 0 : index
    %46 = vector.load %arg6[%c32_39, %c0_40] : memref<96x1xf32, #tpu.memory_space<vmem>>, vector<16x1xf32>
    %47 = vector.broadcast %46 : vector<16x1xf32> to vector<16x512xf32>
    %48 = arith.addf %45, %47 : vector<16x512xf32>
    %cst_41 = arith.constant 0.000000e+00 : f32
    %49 = vector.broadcast %cst_41 : f32 to vector<16x512xf32>
    %50 = arith.maximumf %48, %49 : vector<16x512xf32>
    %c17_i32_42 = arith.constant 17 : i32
    %51 = tpu.dynamic_rotate %50 by %c17_i32_42 dim 1 : vector<16x512xf32>, i32 -> vector<16x512xf32>
    %c72 = arith.constant 72 : index
    %c0_43 = arith.constant 0 : index
    %52 = vector.load %arg7[%c72, %c0_43] : memref<216x512xf32, #tpu.memory_space<vmem>>, vector<16x512xf32>
    %53 = arith.mulf %51, %52 : vector<16x512xf32>
    %c0_44 = arith.constant 0 : index
    %c0_45 = arith.constant 0 : index
    %54 = vector.load %arg10[%c0_44, %c0_45] : memref<144x512xf32, #tpu.memory_space<vmem>>, vector<16x512xf32>
    tpu.vector_store %arg10[%c0_44, %c0_45], %53 {strides = array<i32>} : memref<144x512xf32, #tpu.memory_space<vmem>>, vector<16x512xf32>,
    %c16_i32_46 = arith.constant 16 : i32
    %55 = tpu.dynamic_rotate %50 by %c16_i32_46 dim 1 : vector<16x512xf32>, i32 -> vector<16x512xf32>
    %c88 = arith.constant 88 : index
    %c0_47 = arith.constant 0 : index
    %56 = vector.load %arg7[%c88, %c0_47] : memref<216x512xf32, #tpu.memory_space<vmem>>, vector<16x512xf32>
    %57 = arith.mulf %55, %56 : vector<16x512xf32>
    %c16_48 = arith.constant 16 : index
    %c0_49 = arith.constant 0 : index
    %58 = vector.load %arg10[%c16_48, %c0_49] : memref<144x512xf32, #tpu.memory_space<vmem>>, vector<16x512xf32>
    tpu.vector_store %arg10[%c16_48, %c0_49], %57 {strides = array<i32>} : memref<144x512xf32, #tpu.memory_space<vmem>>, vector<16x512xf32>,
    %c15_i32_50 = arith.constant 15 : i32
    %59 = tpu.dynamic_rotate %50 by %c15_i32_50 dim 1 : vector<16x512xf32>, i32 -> vector<16x512xf32>
    %c104 = arith.constant 104 : index
    %c0_51 = arith.constant 0 : index
    %60 = vector.load %arg7[%c104, %c0_51] : memref<216x512xf32, #tpu.memory_space<vmem>>, vector<16x512xf32>
    %61 = arith.mulf %59, %60 : vector<16x512xf32>
    %c32_52 = arith.constant 32 : index
    %c0_53 = arith.constant 0 : index
    %62 = vector.load %arg10[%c32_52, %c0_53] : memref<144x512xf32, #tpu.memory_space<vmem>>, vector<16x512xf32>
    tpu.vector_store %arg10[%c32_52, %c0_53], %61 {strides = array<i32>} : memref<144x512xf32, #tpu.memory_space<vmem>>, vector<16x512xf32>,
    %c1_i32_54 = arith.constant 1 : i32
    %63 = tpu.dynamic_rotate %50 by %c1_i32_54 dim 1 : vector<16x512xf32>, i32 -> vector<16x512xf32>
    %c120 = arith.constant 120 : index
    %c0_55 = arith.constant 0 : index
    %64 = vector.load %arg7[%c120, %c0_55] : memref<216x512xf32, #tpu.memory_space<vmem>>, vector<16x512xf32>
    %65 = arith.mulf %63, %64 : vector<16x512xf32>
    %c48_56 = arith.constant 48 : index
    %c0_57 = arith.constant 0 : index
    %66 = vector.load %arg10[%c48_56, %c0_57] : memref<144x512xf32, #tpu.memory_space<vmem>>, vector<16x512xf32>
    tpu.vector_store %arg10[%c48_56, %c0_57], %65 {strides = array<i32>} : memref<144x512xf32, #tpu.memory_space<vmem>>, vector<16x512xf32>,
    %c136 = arith.constant 136 : index
    %c0_58 = arith.constant 0 : index
    %67 = vector.load %arg7[%c136, %c0_58] : memref<216x512xf32, #tpu.memory_space<vmem>>, vector<16x512xf32>
    %68 = arith.mulf %50, %67 : vector<16x512xf32>
    %c64_59 = arith.constant 64 : index
    %c0_60 = arith.constant 0 : index
    %69 = vector.load %arg10[%c64_59, %c0_60] : memref<144x512xf32, #tpu.memory_space<vmem>>, vector<16x512xf32>
    tpu.vector_store %arg10[%c64_59, %c0_60], %68 {strides = array<i32>} : memref<144x512xf32, #tpu.memory_space<vmem>>, vector<16x512xf32>,
    %c511_i32_61 = arith.constant 511 : i32
    %70 = tpu.dynamic_rotate %50 by %c511_i32_61 dim 1 : vector<16x512xf32>, i32 -> vector<16x512xf32>
    %c152 = arith.constant 152 : index
    %c0_62 = arith.constant 0 : index
    %71 = vector.load %arg7[%c152, %c0_62] : memref<216x512xf32, #tpu.memory_space<vmem>>, vector<16x512xf32>
    %72 = arith.mulf %70, %71 : vector<16x512xf32>
    %c80 = arith.constant 80 : index
    %c0_63 = arith.constant 0 : index
    %73 = vector.load %arg10[%c80, %c0_63] : memref<144x512xf32, #tpu.memory_space<vmem>>, vector<16x512xf32>
    tpu.vector_store %arg10[%c80, %c0_63], %72 {strides = array<i32>} : memref<144x512xf32, #tpu.memory_space<vmem>>, vector<16x512xf32>,
    %c497_i32_64 = arith.constant 497 : i32
    %74 = tpu.dynamic_rotate %50 by %c497_i32_64 dim 1 : vector<16x512xf32>, i32 -> vector<16x512xf32>
    %c168 = arith.constant 168 : index
    %c0_65 = arith.constant 0 : index
    %75 = vector.load %arg7[%c168, %c0_65] : memref<216x512xf32, #tpu.memory_space<vmem>>, vector<16x512xf32>
    %76 = arith.mulf %74, %75 : vector<16x512xf32>
    %c96 = arith.constant 96 : index
    %c0_66 = arith.constant 0 : index
    %77 = vector.load %arg10[%c96, %c0_66] : memref<144x512xf32, #tpu.memory_space<vmem>>, vector<16x512xf32>
    tpu.vector_store %arg10[%c96, %c0_66], %76 {strides = array<i32>} : memref<144x512xf32, #tpu.memory_space<vmem>>, vector<16x512xf32>,
    %c496_i32_67 = arith.constant 496 : i32
    %78 = tpu.dynamic_rotate %50 by %c496_i32_67 dim 1 : vector<16x512xf32>, i32 -> vector<16x512xf32>
    %c184 = arith.constant 184 : index
    %c0_68 = arith.constant 0 : index
    %79 = vector.load %arg7[%c184, %c0_68] : memref<216x512xf32, #tpu.memory_space<vmem>>, vector<16x512xf32>
    %80 = arith.mulf %78, %79 : vector<16x512xf32>
    %c112 = arith.constant 112 : index
    %c0_69 = arith.constant 0 : index
    %81 = vector.load %arg10[%c112, %c0_69] : memref<144x512xf32, #tpu.memory_space<vmem>>, vector<16x512xf32>
    tpu.vector_store %arg10[%c112, %c0_69], %80 {strides = array<i32>} : memref<144x512xf32, #tpu.memory_space<vmem>>, vector<16x512xf32>,
    %c495_i32_70 = arith.constant 495 : i32
    %82 = tpu.dynamic_rotate %50 by %c495_i32_70 dim 1 : vector<16x512xf32>, i32 -> vector<16x512xf32>
    %c200 = arith.constant 200 : index
    %c0_71 = arith.constant 0 : index
    %83 = vector.load %arg7[%c200, %c0_71] : memref<216x512xf32, #tpu.memory_space<vmem>>, vector<16x512xf32>
    %84 = arith.mulf %82, %83 : vector<16x512xf32>
    %c128 = arith.constant 128 : index
    %c0_72 = arith.constant 0 : index
    %85 = vector.load %arg10[%c128, %c0_72] : memref<144x512xf32, #tpu.memory_space<vmem>>, vector<16x512xf32>
    tpu.vector_store %arg10[%c128, %c0_72], %84 {strides = array<i32>} : memref<144x512xf32, #tpu.memory_space<vmem>>, vector<16x512xf32>,
    %c0_73 = arith.constant 0 : index
    %c0_74 = arith.constant 0 : index
    %86 = vector.load %arg4[%c0_73, %c0_74] : memref<32x144xf32, #tpu.memory_space<vmem>>, vector<32x144xf32>
    %c0_75 = arith.constant 0 : index
    %c0_76 = arith.constant 0 : index
    %87 = vector.load %arg10[%c0_75, %c0_76] : memref<144x512xf32, #tpu.memory_space<vmem>>, vector<144x512xf32>
    %cst_77 = arith.constant dense<0.000000e+00> : vector<32x512xf32>
    %88 = tpu.matmul %86, %87, %cst_77 {dimension_numbers = #tpu.dot_dimension_numbers<[1], [0], [0], [1], [0, 0, 1, 1], [], []>} : vector<32x144xf32>, vector<144x512xf32>, vector<32x512xf32> -> vector<32x512xf32>
    %c48_78 = arith.constant 48 : index
    %c0_79 = arith.constant 0 : index
    %89 = vector.load %arg6[%c48_78, %c0_79] : memref<96x1xf32, #tpu.memory_space<vmem>>, vector<32x1xf32>
    %90 = vector.broadcast %89 : vector<32x1xf32> to vector<32x512xf32>
    %91 = arith.addf %88, %90 : vector<32x512xf32>
    %cst_80 = arith.constant 0.000000e+00 : f32
    %92 = vector.broadcast %cst_80 : f32 to vector<32x512xf32>
    %93 = arith.maximumf %91, %92 : vector<32x512xf32>
    %c0_81 = arith.constant 0 : index
    %c0_82 = arith.constant 0 : index
    %94 = vector.load %arg5[%c0_81, %c0_82] : memref<16x32xf32, #tpu.memory_space<vmem>>, vector<16x32xf32>
    %cst_83 = arith.constant dense<0.000000e+00> : vector<16x512xf32>
    %95 = tpu.matmul %94, %93, %cst_83 {dimension_numbers = #tpu.dot_dimension_numbers<[1], [0], [0], [1], [0, 0, 1, 1], [], []>} : vector<16x32xf32>, vector<32x512xf32>, vector<16x512xf32> -> vector<16x512xf32>
    %c80_84 = arith.constant 80 : index
    %c0_85 = arith.constant 0 : index
    %96 = vector.load %arg6[%c80_84, %c0_85] : memref<96x1xf32, #tpu.memory_space<vmem>>, vector<16x1xf32>
    %97 = vector.broadcast %96 : vector<16x1xf32> to vector<16x512xf32>
    %98 = arith.addf %95, %97 : vector<16x512xf32>
    %c0_86 = arith.constant 0 : index
    %c0_87 = arith.constant 0 : index
    %99 = vector.load %arg8[%c0_86, %c0_87] : memref<16x512xf32, #tpu.memory_space<vmem>>, vector<16x512xf32>
    tpu.vector_store %arg8[%c0_86, %c0_87], %98 {strides = array<i32>} : memref<16x512xf32, #tpu.memory_space<vmem>>, vector<16x512xf32>,
    return
  }
  func.func @transform_0(%arg0: i32) -> (i32, i32) {
    %c0_i32 = arith.constant 0 : i32
    %c0_i32_0 = arith.constant 0 : i32
    return %c0_i32, %arg0 : i32, i32
  }
  func.func @transform_1(%arg0: i32) -> (i32, i32) {
    %c0_i32 = arith.constant 0 : i32
    %c0_i32_0 = arith.constant 0 : i32
    %c0_i32_1 = arith.constant 0 : i32
    return %c0_i32, %c0_i32_0 : i32, i32
  }
  func.func @transform_2(%arg0: i32) -> (i32, i32) {
    %c0_i32 = arith.constant 0 : i32
    %c0_i32_0 = arith.constant 0 : i32
    %c0_i32_1 = arith.constant 0 : i32
    return %c0_i32, %c0_i32_0 : i32, i32
  }
  func.func @transform_3(%arg0: i32) -> (i32, i32) {
    %c0_i32 = arith.constant 0 : i32
    %c0_i32_0 = arith.constant 0 : i32
    %c0_i32_1 = arith.constant 0 : i32
    return %c0_i32, %c0_i32_0 : i32, i32
  }
  func.func @transform_4(%arg0: i32) -> (i32, i32) {
    %c0_i32 = arith.constant 0 : i32
    %c0_i32_0 = arith.constant 0 : i32
    %c0_i32_1 = arith.constant 0 : i32
    return %c0_i32, %c0_i32_0 : i32, i32
  }
  func.func @transform_5(%arg0: i32) -> (i32, i32) {
    %c0_i32 = arith.constant 0 : i32
    %c0_i32_0 = arith.constant 0 : i32
    %c0_i32_1 = arith.constant 0 : i32
    return %c0_i32, %c0_i32_0 : i32, i32
  }
  func.func @transform_6(%arg0: i32) -> (i32, i32) {
    %c0_i32 = arith.constant 0 : i32
    %c0_i32_0 = arith.constant 0 : i32
    %c0_i32_1 = arith.constant 0 : i32
    return %c0_i32, %c0_i32_0 : i32, i32
  }
  func.func @transform_7(%arg0: i32) -> (i32, i32) {
    %c0_i32 = arith.constant 0 : i32
    %c0_i32_0 = arith.constant 0 : i32
    return %c0_i32, %arg0 : i32, i32
  }
}

</mosaic_0001>

<llo_original>
// kernel: forward.1
$region0: #{forward.1}
  #allocation0 [shape = 'u32[]', space=smem, size = 0x4, offset = 0x4, fixed_abs, tag = 'smem constant byte address 0x4 - core index']
  #allocation1 [shape = 'u32[144,128]{1,0:T(1,128)}', space=vmem, size = 0x12000, scoped, tag = 'internal scratch']
  #allocation2 [shape = 'f32[72,512]{1,0:T(8,128)}', space=vmem, size = 0x24000, scoped, tag = 'scratch operand']
  #allocation3 [shape = 'f32[144,512]{1,0:T(8,128)}', space=vmem, size = 0x48000, scoped, tag = 'scratch operand']
  %s0 = inlined_call_operand.vmem [shape: f32[8,512], index: 0, kind: input, shape index: {}]
  %s1 = inlined_call_operand.vmem [shape: f32[32,72], index: 1, kind: input, shape index: {}]
  %s2 = inlined_call_operand.vmem [shape: f32[16,32], index: 2, kind: input, shape index: {}]
  %s3 = inlined_call_operand.vmem [shape: f32[32,144], index: 3, kind: input, shape index: {}]
  %s4 = inlined_call_operand.vmem [shape: f32[16,32], index: 4, kind: input, shape index: {}]
  %s5 = inlined_call_operand.vmem [shape: f32[96,1], index: 5, kind: input, shape index: {}]
  %s6 = inlined_call_operand.hbm [shape: f32[216,512], index: 6, kind: input, shape index: {}]
  %s7 = inlined_call_operand.vmem [shape: f32[16,512], index: 7, kind: output, shape index: {}]
  %s8 = sld [smem:[#allocation0]]
  $region42: #{forward.1} parent=0
    _
  %s10 = ssub.s32 1, %s8
  %s11 = scalar_select 0, %s10, %s8
  $region1: #{forward.1} parent=0
    #allocation4 [shape = 'u8[442368]{0}', space=vmem, size = 0x6c000, scoped, tag = 'input window, operand 6, single buffered']
    #allocation5 [shape = 's32[1]{0}', space=sflag, size = 0x4, scoped, tag = 'scoped memory for forward.1']
    %12 = vsyncpa [#allocation5], 0
    // Predicated region
    $region2: #{forward.1} parent=1 // pred_check
      _
    $region3: #{forward.1} parent=1 // pred_check_branch
      %14 = sbr.rel (0) target = $region5
    $region4: #{forward.1} parent=1 // pred_region
      _
    $region5: #{forward.1} parent=1 // pred_fallthru
      _
    // Predicated region
    $region6: #{forward.1} parent=1 // pred_check
      _
    $region7: #{forward.1} parent=1 // pred_check_branch
      %16 = sbr.rel (0) target = $region9
    $region8: #{forward.1} parent=1 // pred_region
      _
    $region9: #{forward.1} parent=1 // pred_fallthru
      _
    // Predicated region
    $region10: #{forward.1} parent=1 // pred_check
      _
    $region11: #{forward.1} parent=1 // pred_check_branch
      %18 = sbr.rel (0) target = $region13
    $region12: #{forward.1} parent=1 // pred_region
      _
    $region13: #{forward.1} parent=1 // pred_fallthru
      _
    // Predicated region
    $region14: #{forward.1} parent=1 // pred_check
      _
    $region15: #{forward.1} parent=1 // pred_check_branch
      %20 = sbr.rel (0) target = $region17
    $region16: #{forward.1} parent=1 // pred_region
      _
    $region17: #{forward.1} parent=1 // pred_fallthru
      _
    // Predicated region
    $region18: #{forward.1} parent=1 // pred_check
      _
    $region19: #{forward.1} parent=1 // pred_check_branch
      %22 = sbr.rel (0) target = $region21
    $region20: #{forward.1} parent=1 // pred_region
      _
    $region21: #{forward.1} parent=1 // pred_fallthru
      _
    // Predicated region
    $region22: #{forward.1} parent=1 // pred_check
      _
    $region23: #{forward.1} parent=1 // pred_check_branch
      %24 = sbr.rel (0) target = $region25
    $region24: #{forward.1} parent=1 // pred_region
      _
    $region25: #{forward.1} parent=1 // pred_fallthru
      _
    // Predicated region
    $region26: #{forward.1} parent=1 // pred_check
      _
    $region27: #{forward.1} parent=1 // pred_check_branch
      %26 = sbr.rel (0) target = $region29
    $region28: #{forward.1} parent=1 // pred_region
      %s28 = ssub.s32 13824, 13824
      %29 = vsyncadd [#allocation5], %s28
      %s30 = sshll.u32 [#allocation4], 4
      %s31 = int_to_ptr.vmem [resolvable:$true] %s30
      %36 = dma.hbm_to_vmem [thread:$0]  %s6, 13824, %s31, [#allocation5], 512, 512, 32
    $region29: #{forward.1} parent=1 // pred_fallthru
      _
    // Predicated region
    $region30: #{forward.1} parent=1 // pred_check
      _
    $region31: #{forward.1} parent=1 // pred_check_branch
      %38 = sbr.rel (0) target = $region33
    $region32: #{forward.1} parent=1 // pred_region
      %39 = dma.done [#allocation5], 13824
    $region33: #{forward.1} parent=1 // pred_fallthru
      _
    %v40 = vld [vmem:[%s0] sm:$0xff]
    %v41 = vld [vmem:[%s0 + $0x8] sm:$0xff]
    %v42 = vld [vmem:[%s0 + $0x10] sm:$0xff]
    %v43 = vld [vmem:[%s0 + $0x18] sm:$0xff]
    %44 = vrot.lane.b32.xlu0 %v40, 17
    %v45 = vpop.permute.xlu0 %44
    %46 = vrot.lane.b32.xlu0 %v41, 17
    %v47 = vpop.permute.xlu0 %46
    %48 = vrot.lane.b32.xlu0 %v42, 17
    %v49 = vpop.permute.xlu0 %48
    %50 = vrot.lane.b32.xlu0 %v43, 17
    %v51 = vpop.permute.xlu0 %50
    %v52 = vlaneseq
    %v53 = vand.u32 %v52, 127
    %vm54 = vcmp.lt.s32.totalorder %v53, 17
    %v55 = vsel %vm54, %v49, %v51
    %v56 = vsel %vm54, %v47, %v49
    %v57 = vsel %vm54, %v45, %v47
    %v58 = vsel %vm54, %v51, %v45
    %v59 = vld [vmem:[#allocation4] sm:$0xff]
    %v60 = vld [vmem:[#allocation4 + $0x8] sm:$0xff]
    %v61 = vld [vmem:[#allocation4 + $0x10] sm:$0xff]
    %v62 = vld [vmem:[#allocation4 + $0x18] sm:$0xff]
    %v63 = vmul.f32 %v58, %v59
    %v64 = vmul.f32 %v57, %v60
    %v65 = vmul.f32 %v56, %v61
    %v66 = vmul.f32 %v55, %v62
    %67 = vst [vmem:[#allocation2] sm:$0xff] %v63
    %68 = vst [vmem:[#allocation2 + $0x8] sm:$0xff] %v64
    %69 = vst [vmem:[#allocation2 + $0x10] sm:$0xff] %v65
    %70 = vst [vmem:[#allocation2 + $0x18] sm:$0xff] %v66
    %71 = vrot.lane.b32.xlu0 %v40, 16
    %v72 = vpop.permute.xlu0 %71
    %73 = vrot.lane.b32.xlu0 %v41, 16
    %v74 = vpop.permute.xlu0 %73
    %75 = vrot.lane.b32.xlu0 %v42, 16
    %v76 = vpop.permute.xlu0 %75
    %77 = vrot.lane.b32.xlu0 %v43, 16
    %v78 = vpop.permute.xlu0 %77
    %vm79 = vcmp.lt.s32.totalorder %v53, 16
    %v80 = vsel %vm79, %v76, %v78
    %v81 = vsel %vm79, %v74, %v76
    %v82 = vsel %vm79, %v72, %v74
    %v83 = vsel %vm79, %v78, %v72
    %v84 = vld [vmem:[#allocation4 + $0x20] sm:$0xff]
    %v85 = vld [vmem:[#allocation4 + $0x28] sm:$0xff]
    %v86 = vld [vmem:[#allocation4 + $0x30] sm:$0xff]
    %v87 = vld [vmem:[#allocation4 + $0x38] sm:$0xff]
    %v88 = vmul.f32 %v83, %v84
    %v89 = vmul.f32 %v82, %v85
    %v90 = vmul.f32 %v81, %v86
    %v91 = vmul.f32 %v80, %v87
    %92 = vst [vmem:[#allocation2 + $0x20] sm:$0xff] %v88
    %93 = vst [vmem:[#allocation2 + $0x28] sm:$0xff] %v89
    %94 = vst [vmem:[#allocation2 + $0x30] sm:$0xff] %v90
    %95 = vst [vmem:[#allocation2 + $0x38] sm:$0xff] %v91
    %96 = vrot.lane.b32.xlu0 %v40, 15
    %v97 = vpop.permute.xlu0 %96
    %98 = vrot.lane.b32.xlu0 %v41, 15
    %v99 = vpop.permute.xlu0 %98
    %100 = vrot.lane.b32.xlu0 %v42, 15
    %v101 = vpop.permute.xlu0 %100
    %102 = vrot.lane.b32.xlu0 %v43, 15
    %v103 = vpop.permute.xlu0 %102
    %vm104 = vcmp.lt.s32.totalorder %v53, 15
    %v105 = vsel %vm104, %v101, %v103
    %v106 = vsel %vm104, %v99, %v101
    %v107 = vsel %vm104, %v97, %v99
    %v108 = vsel %vm104, %v103, %v97
    %v109 = vld [vmem:[#allocation4 + $0x40] sm:$0xff]
    %v110 = vld [vmem:[#allocation4 + $0x48] sm:$0xff]
    %v111 = vld [vmem:[#allocation4 + $0x50] sm:$0xff]
    %v112 = vld [vmem:[#allocation4 + $0x58] sm:$0xff]
    %v113 = vmul.f32 %v108, %v109
    %v114 = vmul.f32 %v107, %v110
    %v115 = vmul.f32 %v106, %v111
    %v116 = vmul.f32 %v105, %v112
    %117 = vst [vmem:[#allocation2 + $0x40] sm:$0xff] %v113
    %118 = vst [vmem:[#allocation2 + $0x48] sm:$0xff] %v114
    %119 = vst [vmem:[#allocation2 + $0x50] sm:$0xff] %v115
    %120 = vst [vmem:[#allocation2 + $0x58] sm:$0xff] %v116
    %121 = vrot.lane.b32.xlu0 %v40, 1
    %v122 = vpop.permute.xlu0 %121
    %123 = vrot.lane.b32.xlu0 %v41, 1
    %v124 = vpop.permute.xlu0 %123
    %125 = vrot.lane.b32.xlu0 %v42, 1
    %v126 = vpop.permute.xlu0 %125
    %127 = vrot.lane.b32.xlu0 %v43, 1
    %v128 = vpop.permute.xlu0 %127
    %vm129 = vcmp.lt.s32.totalorder %v53, 1
    %v130 = vsel %vm129, %v126, %v128
    %v131 = vsel %vm129, %v124, %v126
    %v132 = vsel %vm129, %v122, %v124
    %v133 = vsel %vm129, %v128, %v122
    %v134 = vld [vmem:[#allocation4 + $0x60] sm:$0xff]
    %v135 = vld [vmem:[#allocation4 + $0x68] sm:$0xff]
    %v136 = vld [vmem:[#allocation4 + $0x70] sm:$0xff]
    %v137 = vld [vmem:[#allocation4 + $0x78] sm:$0xff]
    %v138 = vmul.f32 %v133, %v134
    %v139 = vmul.f32 %v132, %v135
    %v140 = vmul.f32 %v131, %v136
    %v141 = vmul.f32 %v130, %v137
    %142 = vst [vmem:[#allocation2 + $0x60] sm:$0xff] %v138
    %143 = vst [vmem:[#allocation2 + $0x68] sm:$0xff] %v139
    %144 = vst [vmem:[#allocation2 + $0x70] sm:$0xff] %v140
    %145 = vst [vmem:[#allocation2 + $0x78] sm:$0xff] %v141
    %v146 = vld [vmem:[#allocation4 + $0x80] sm:$0xff]
    %v147 = vld [vmem:[#allocation4 + $0x88] sm:$0xff]
    %v148 = vld [vmem:[#allocation4 + $0x90] sm:$0xff]
    %v149 = vld [vmem:[#allocation4 + $0x98] sm:$0xff]
    %v150 = vmul.f32 %v40, %v146
    %v151 = vmul.f32 %v41, %v147
    %v152 = vmul.f32 %v42, %v148
    %v153 = vmul.f32 %v43, %v149
    %154 = vst [vmem:[#allocation2 + $0x80] sm:$0xff] %v150
    %155 = vst [vmem:[#allocation2 + $0x88] sm:$0xff] %v151
    %156 = vst [vmem:[#allocation2 + $0x90] sm:$0xff] %v152
    %157 = vst [vmem:[#allocation2 + $0x98] sm:$0xff] %v153
    %158 = vrot.lane.b32.xlu0 %v40, 127
    %v159 = vpop.permute.xlu0 %158
    %160 = vrot.lane.b32.xlu0 %v41, 127
    %v161 = vpop.permute.xlu0 %160
    %162 = vrot.lane.b32.xlu0 %v42, 127
    %v163 = vpop.permute.xlu0 %162
    %164 = vrot.lane.b32.xlu0 %v43, 127
    %v165 = vpop.permute.xlu0 %164
    %vm166 = vcmp.lt.s32.totalorder %v53, 127
    %v167 = vsel %vm166, %v163, %v165
    %v168 = vsel %vm166, %v161, %v163
    %v169 = vsel %vm166, %v159, %v161
    %v170 = vsel %vm166, %v165, %v159
    %v171 = vld [vmem:[#allocation4 + $0xa0] sm:$0xff]
    %v172 = vld [vmem:[#allocation4 + $0xa8] sm:$0xff]
    %v173 = vld [vmem:[#allocation4 + $0xb0] sm:$0xff]
    %v174 = vld [vmem:[#allocation4 + $0xb8] sm:$0xff]
    %v175 = vmul.f32 %v169, %v171
    %v176 = vmul.f32 %v168, %v172
    %v177 = vmul.f32 %v167, %v173
    %v178 = vmul.f32 %v170, %v174
    %179 = vst [vmem:[#allocation2 + $0xa0] sm:$0xff] %v175
    %180 = vst [vmem:[#allocation2 + $0xa8] sm:$0xff] %v176
    %181 = vst [vmem:[#allocation2 + $0xb0] sm:$0xff] %v177
    %182 = vst [vmem:[#allocation2 + $0xb8] sm:$0xff] %v178
    %183 = vrot.lane.b32.xlu0 %v40, 113
    %v184 = vpop.permute.xlu0 %183
    %185 = vrot.lane.b32.xlu0 %v41, 113
    %v186 = vpop.permute.xlu0 %185
    %187 = vrot.lane.b32.xlu0 %v42, 113
    %v188 = vpop.permute.xlu0 %187
    %189 = vrot.lane.b32.xlu0 %v43, 113
    %v190 = vpop.permute.xlu0 %189
    %vm191 = vcmp.lt.s32.totalorder %v53, 113
    %v192 = vsel %vm191, %v188, %v190
    %v193 = vsel %vm191, %v186, %v188
    %v194 = vsel %vm191, %v184, %v186
    %v195 = vsel %vm191, %v190, %v184
    %v196 = vld [vmem:[#allocation4 + $0xc0] sm:$0xff]
    %v197 = vld [vmem:[#allocation4 + $0xc8] sm:$0xff]
    %v198 = vld [vmem:[#allocation4 + $0xd0] sm:$0xff]
    %v199 = vld [vmem:[#allocation4 + $0xd8] sm:$0xff]
    %v200 = vmul.f32 %v194, %v196
    %v201 = vmul.f32 %v193, %v197
    %v202 = vmul.f32 %v192, %v198
    %v203 = vmul.f32 %v195, %v199
    %204 = vst [vmem:[#allocation2 + $0xc0] sm:$0xff] %v200
    %205 = vst [vmem:[#allocation2 + $0xc8] sm:$0xff] %v201
    %206 = vst [vmem:[#allocation2 + $0xd0] sm:$0xff] %v202
    %207 = vst [vmem:[#allocation2 + $0xd8] sm:$0xff] %v203
    %208 = vrot.lane.b32.xlu0 %v40, 112
    %v209 = vpop.permute.xlu0 %208
    %210 = vrot.lane.b32.xlu0 %v41, 112
    %v211 = vpop.permute.xlu0 %210
    %212 = vrot.lane.b32.xlu0 %v42, 112
    %v213 = vpop.permute.xlu0 %212
    %214 = vrot.lane.b32.xlu0 %v43, 112
    %v215 = vpop.permute.xlu0 %214
    %vm216 = vcmp.lt.s32.totalorder %v53, 112
    %v217 = vsel %vm216, %v213, %v215
    %v218 = vsel %vm216, %v211, %v213
    %v219 = vsel %vm216, %v209, %v211
    %v220 = vsel %vm216, %v215, %v209
    %v221 = vld [vmem:[#allocation4 + $0xe0] sm:$0xff]
    %v222 = vld [vmem:[#allocation4 + $0xe8] sm:$0xff]
    %v223 = vld [vmem:[#allocation4 + $0xf0] sm:$0xff]
    %v224 = vld [vmem:[#allocation4 + $0xf8] sm:$0xff]
    %v225 = vmul.f32 %v219, %v221
    %v226 = vmul.f32 %v218, %v222
    %v227 = vmul.f32 %v217, %v223
    %v228 = vmul.f32 %v220, %v224
    %229 = vst [vmem:[#allocation2 + $0xe0] sm:$0xff] %v225
    %230 = vst [vmem:[#allocation2 + $0xe8] sm:$0xff] %v226
    %231 = vst [vmem:[#allocation2 + $0xf0] sm:$0xff] %v227
    %232 = vst [vmem:[#allocation2 + $0xf8] sm:$0xff] %v228
    %233 = vrot.lane.b32.xlu0 %v40, 111
    %v234 = vpop.permute.xlu0 %233
    %235 = vrot.lane.b32.xlu0 %v41, 111
    %v236 = vpop.permute.xlu0 %235
    %237 = vrot.lane.b32.xlu0 %v42, 111
    %v238 = vpop.permute.xlu0 %237
    %239 = vrot.lane.b32.xlu0 %v43, 111
    %v240 = vpop.permute.xlu0 %239
    %vm241 = vcmp.lt.s32.totalorder %v53, 111
    %v242 = vsel %vm241, %v238, %v240
    %v243 = vsel %vm241, %v236, %v238
    %v244 = vsel %vm241, %v234, %v236
    %v245 = vsel %vm241, %v240, %v234
    %v246 = vld [vmem:[#allocation4 + $0x100] sm:$0xff]
    %v247 = vld [vmem:[#allocation4 + $0x108] sm:$0xff]
    %v248 = vld [vmem:[#allocation4 + $0x110] sm:$0xff]
    %v249 = vld [vmem:[#allocation4 + $0x118] sm:$0xff]
    %v250 = vmul.f32 %v244, %v246
    %v251 = vmul.f32 %v243, %v247
    %v252 = vmul.f32 %v242, %v248
    %v253 = vmul.f32 %v245, %v249
    %254 = vst [vmem:[#allocation2 + $0x100] sm:$0xff] %v250
    %255 = vst [vmem:[#allocation2 + $0x108] sm:$0xff] %v251
    %256 = vst [vmem:[#allocation2 + $0x110] sm:$0xff] %v252
    %257 = vst [vmem:[#allocation2 + $0x118] sm:$0xff] %v253
    %v258 = vld [vmem:[%s1] sm:$0xff]
    %v259 = vld [vmem:[%s1 + $0x8] sm:$0xff]
    %v260 = vld [vmem:[%s1 + $0x10] sm:$0xff]
    %v261 = vld [vmem:[%s1 + $0x18] sm:$0xff]
    %v262 = vld [vmem:[#allocation2] sm:$0xff]
    %v263 = vld [vmem:[#allocation2 + $0x8] sm:$0xff]
    %v264 = vld [vmem:[#allocation2 + $0x10] sm:$0xff]
    %v265 = vld [vmem:[#allocation2 + $0x18] sm:$0xff]
    %v266 = vld [vmem:[#allocation2 + $0x20] sm:$0xff]
    %v267 = vld [vmem:[#allocation2 + $0x28] sm:$0xff]
    %v268 = vld [vmem:[#allocation2 + $0x30] sm:$0xff]
    %v269 = vld [vmem:[#allocation2 + $0x38] sm:$0xff]
    %v270 = vld [vmem:[#allocation2 + $0x40] sm:$0xff]
    %v271 = vld [vmem:[#allocation2 + $0x48] sm:$0xff]
    %v272 = vld [vmem:[#allocation2 + $0x50] sm:$0xff]
    %v273 = vld [vmem:[#allocation2 + $0x58] sm:$0xff]
    %v274 = vld [vmem:[#allocation2 + $0x60] sm:$0xff]
    %v275 = vld [vmem:[#allocation2 + $0x68] sm:$0xff]
    %v276 = vld [vmem:[#allocation2 + $0x70] sm:$0xff]
    %v277 = vld [vmem:[#allocation2 + $0x78] sm:$0xff]
    %v278 = vld [vmem:[#allocation2 + $0x80] sm:$0xff]
    %v279 = vld [vmem:[#allocation2 + $0x88] sm:$0xff]
    %v280 = vld [vmem:[#allocation2 + $0x90] sm:$0xff]
    %v281 = vld [vmem:[#allocation2 + $0x98] sm:$0xff]
    %v282 = vld [vmem:[#allocation2 + $0xa0] sm:$0xff]
    %v283 = vld [vmem:[#allocation2 + $0xa8] sm:$0xff]
    %v284 = vld [vmem:[#allocation2 + $0xb0] sm:$0xff]
    %v285 = vld [vmem:[#allocation2 + $0xb8] sm:$0xff]
    %v286 = vld [vmem:[#allocation2 + $0xc0] sm:$0xff]
    %v287 = vld [vmem:[#allocation2 + $0xc8] sm:$0xff]
    %v288 = vld [vmem:[#allocation2 + $0xd0] sm:$0xff]
    %v289 = vld [vmem:[#allocation2 + $0xd8] sm:$0xff]
    %v290 = vld [vmem:[#allocation2 + $0xe0] sm:$0xff]
    %v291 = vld [vmem:[#allocation2 + $0xe8] sm:$0xff]
    %v292 = vld [vmem:[#allocation2 + $0xf0] sm:$0xff]
    %v293 = vld [vmem:[#allocation2 + $0xf8] sm:$0xff]
    %v294 = vld [vmem:[#allocation2 + $0x100] sm:$0xff]
    %v295 = vld [vmem:[#allocation2 + $0x108] sm:$0xff]
    %v296 = vld [vmem:[#allocation2 + $0x110] sm:$0xff]
    %v297 = vld [vmem:[#allocation2 + $0x118] sm:$0xff]
    %v298 = vld [vmem:[%s5] sm:$0xff]
    %v299 = vld [vmem:[%s5 + $0x8] sm:$0xff]
    %v300 = vld [vmem:[%s5 + $0x10] sm:$0xff]
    %v301 = vld [vmem:[%s5 + $0x18] sm:$0xff]
    %303 = vset.pattern.permute.xlu0 0
    %304 = vperm.xlu0 %303, %v298
    %v305 = vpop.permute.xlu0 %304
    %308 = vset.pattern.permute.xlu0 0
    %309 = vperm.xlu0 %308, %v299
    %v310 = vpop.permute.xlu0 %309
    %313 = vset.pattern.permute.xlu0 0
    %314 = vperm.xlu0 %313, %v300
    %v315 = vpop.permute.xlu0 %314
    %318 = vset.pattern.permute.xlu0 0
    %319 = vperm.xlu0 %318, %v301
    %v320 = vpop.permute.xlu0 %319
    %vm322 = vcmask 588800
    %v324 = vsel %vm322, %v258, 0
    %v327 = vsel %vm322, %v259, 0
    %v330 = vsel %vm322, %v260, 0
    %v333 = vsel %vm322, %v261, 0
    %335 = vmatprep.subr.mxu0 0.0
    %336 = vmatpush1.msra.mxu0 0.0
    %337 = vmatprep.subr.mxu0 0.0
    %338 = vmatpush1.msra.mxu0 0.0
    %339 = vmatprep.subr.mxu0 0.0
    %340 = vmatpush1.msra.mxu0 0.0
    %341 = vmatprep.subr.mxu0 0.0
    %342 = vmatpush1.msra.mxu0 0.0
    %343 = vmatprep.subr.mxu0 0.0
    %344 = vmatpush1.msra.mxu0 0.0
    %345 = vmatprep.subr.mxu0 0.0
    %346 = vmatpush1.msra.mxu0 0.0
    %347 = vmatprep.subr.mxu0 0.0
    %348 = vmatpush1.msra.mxu0 0.0
    %349 = vmatprep.subr.mxu0 %v295
    %350 = vmatpush1.msra.mxu0 %v294
    %351 = vmatprep.subr.mxu0 %v291
    %352 = vmatpush1.msra.mxu0 %v290
    %353 = vmatprep.subr.mxu0 %v287
    %354 = vmatpush1.msra.mxu0 %v286
    %355 = vmatprep.subr.mxu0 %v283
    %356 = vmatpush1.msra.mxu0 %v282
    %357 = vmatprep.subr.mxu0 %v279
    %358 = vmatpush1.msra.mxu0 %v278
    %359 = vmatprep.subr.mxu0 %v275
    %360 = vmatpush1.msra.mxu0 %v274
    %361 = vmatprep.subr.mxu0 %v271
    %362 = vmatpush1.msra.mxu0 %v270
    %363 = vmatprep.subr.mxu0 %v267
    %364 = vmatpush1.msra.mxu0 %v266
    %365 = vmatprep.subr.mxu0 %v263
    %366 = vmatpush1.msra.mxu0 %v262
    %367 = vmatprep.subr.mxu0 0.0
    %368 = vmatpush2.msra.mxu0 0.0
    %369 = vmatprep.subr.mxu0 0.0
    %370 = vmatpush2.msra.mxu0 0.0
    %371 = vmatprep.subr.mxu0 0.0
    %372 = vmatpush2.msra.mxu0 0.0
    %373 = vmatprep.subr.mxu0 0.0
    %374 = vmatpush2.msra.mxu0 0.0
    %375 = vmatprep.subr.mxu0 0.0
    %376 = vmatpush2.msra.mxu0 0.0
    %377 = vmatprep.subr.mxu0 0.0
    %378 = vmatpush2.msra.mxu0 0.0
    %379 = vmatprep.subr.mxu0 0.0
    %380 = vmatpush2.msra.mxu0 0.0
    %381 = vmatprep.subr.mxu0 0.0
    %382 = vmatpush2.msra.mxu0 0.0
    %383 = vmatprep.subr.mxu0 0.0
    %384 = vmatpush2.msra.mxu0 0.0
    %385 = vmatprep.subr.mxu0 0.0
    %386 = vmatpush2.msra.mxu0 0.0
    %387 = vmatprep.subr.mxu0 0.0
    %388 = vmatpush2.msra.mxu0 0.0
    %389 = vmatprep.subr.mxu0 0.0
    %390 = vmatpush2.msra.mxu0 0.0
    %391 = vmatprep.subr.mxu0 0.0
    %392 = vmatpush2.msra.mxu0 0.0
    %393 = vmatprep.subr.mxu0 0.0
    %394 = vmatpush2.msra.mxu0 0.0
    %395 = vmatprep.subr.mxu0 0.0
    %396 = vmatpush2.msra.mxu0 0.0
    %397 = vmatprep.subr.mxu0 0.0
    %398 = vmatpush2.msra.mxu0 0.0
    %399 = vmatprep.mubr.f32.mxu0 0.0
    %400 = vmatmul.mubr.f32.gmra.mxu0 %v324
    %v401 = vpop.f32.mrf.mxu0
    %v402 = vadd.f32 %v305, %v401
    %v403 = vpop.f32.mrf.mxu0
    %v404 = vadd.f32 %v305, %v403
    %405 = vmatprep.mubr.f32.mxu0 0.0
    %406 = vmatmul.mubr.f32.gmra.mxu0 %v327
    %v407 = vpop.f32.mrf.mxu0
    %v408 = vadd.f32 %v310, %v407
    %v409 = vpop.f32.mrf.mxu0
    %v410 = vadd.f32 %v310, %v409
    %411 = vmatprep.mubr.f32.mxu0 0.0
    %412 = vmatmul.mubr.f32.gmra.mxu0 %v330
    %v413 = vpop.f32.mrf.mxu0
    %v414 = vadd.f32 %v315, %v413
    %v415 = vpop.f32.mrf.mxu0
    %v416 = vadd.f32 %v315, %v415
    %417 = vmatprep.mubr.f32.mxu0 0.0
    %418 = vmatmul.mubr.f32.gmra.mxu0 %v333
    %v419 = vpop.f32.mrf.mxu0
    %v420 = vadd.f32 %v320, %v419
    %v421 = vpop.f32.mrf.mxu0
    %v422 = vadd.f32 %v320, %v421
    %423 = vdwg.mxu0
    %424 = vmatprep.subr.mxu0 0.0
    %425 = vmatpush1.msra.mxu0 0.0
    %426 = vmatprep.subr.mxu0 0.0
    %427 = vmatpush1.msra.mxu0 0.0
    %428 = vmatprep.subr.mxu0 0.0
    %429 = vmatpush1.msra.mxu0 0.0
    %430 = vmatprep.subr.mxu0 0.0
    %431 = vmatpush1.msra.mxu0 0.0
    %432 = vmatprep.subr.mxu0 0.0
    %433 = vmatpush1.msra.mxu0 0.0
    %434 = vmatprep.subr.mxu0 0.0
    %435 = vmatpush1.msra.mxu0 0.0
    %436 = vmatprep.subr.mxu0 0.0
    %437 = vmatpush1.msra.mxu0 0.0
    %438 = vmatprep.subr.mxu0 %v297
    %439 = vmatpush1.msra.mxu0 %v296
    %440 = vmatprep.subr.mxu0 %v293
    %441 = vmatpush1.msra.mxu0 %v292
    %442 = vmatprep.subr.mxu0 %v289
    %443 = vmatpush1.msra.mxu0 %v288
    %444 = vmatprep.subr.mxu0 %v285
    %445 = vmatpush1.msra.mxu0 %v284
    %446 = vmatprep.subr.mxu0 %v281
    %447 = vmatpush1.msra.mxu0 %v280
    %448 = vmatprep.subr.mxu0 %v277
    %449 = vmatpush1.msra.mxu0 %v276
    %450 = vmatprep.subr.mxu0 %v273
    %451 = vmatpush1.msra.mxu0 %v272
    %452 = vmatprep.subr.mxu0 %v269
    %453 = vmatpush1.msra.mxu0 %v268
    %454 = vmatprep.subr.mxu0 %v265
    %455 = vmatpush1.msra.mxu0 %v264
    %456 = vmatprep.subr.mxu0 0.0
    %457 = vmatpush2.msra.mxu0 0.0
    %458 = vmatprep.subr.mxu0 0.0
    %459 = vmatpush2.msra.mxu0 0.0
    %460 = vmatprep.subr.mxu0 0.0
    %461 = vmatpush2.msra.mxu0 0.0
    %462 = vmatprep.subr.mxu0 0.0
    %463 = vmatpush2.msra.mxu0 0.0
    %464 = vmatprep.subr.mxu0 0.0
    %465 = vmatpush2.msra.mxu0 0.0
    %466 = vmatprep.subr.mxu0 0.0
    %467 = vmatpush2.msra.mxu0 0.0
    %468 = vmatprep.subr.mxu0 0.0
    %469 = vmatpush2.msra.mxu0 0.0
    %470 = vmatprep.subr.mxu0 0.0
    %471 = vmatpush2.msra.mxu0 0.0
    %472 = vmatprep.subr.mxu0 0.0
    %473 = vmatpush2.msra.mxu0 0.0
    %474 = vmatprep.subr.mxu0 0.0
    %475 = vmatpush2.msra.mxu0 0.0
    %476 = vmatprep.subr.mxu0 0.0
    %477 = vmatpush2.msra.mxu0 0.0
    %478 = vmatprep.subr.mxu0 0.0
    %479 = vmatpush2.msra.mxu0 0.0
    %480 = vmatprep.subr.mxu0 0.0
    %481 = vmatpush2.msra.mxu0 0.0
    %482 = vmatprep.subr.mxu0 0.0
    %483 = vmatpush2.msra.mxu0 0.0
    %484 = vmatprep.subr.mxu0 0.0
    %485 = vmatpush2.msra.mxu0 0.0
    %486 = vmatprep.subr.mxu0 0.0
    %487 = vmatpush2.msra.mxu0 0.0
    %488 = vmatprep.mubr.f32.mxu0 0.0
    %489 = vmatmul.mubr.f32.gmra.mxu0 %v324
    %v490 = vpop.f32.mrf.mxu0
    %v491 = vadd.f32 %v305, %v490
    %v492 = vpop.f32.mrf.mxu0
    %v493 = vadd.f32 %v305, %v492
    %494 = vmatprep.mubr.f32.mxu0 0.0
    %495 = vmatmul.mubr.f32.gmra.mxu0 %v327
    %v496 = vpop.f32.mrf.mxu0
    %v497 = vadd.f32 %v310, %v496
    %v498 = vpop.f32.mrf.mxu0
    %v499 = vadd.f32 %v310, %v498
    %500 = vmatprep.mubr.f32.mxu0 0.0
    %501 = vmatmul.mubr.f32.gmra.mxu0 %v330
    %v502 = vpop.f32.mrf.mxu0
    %v503 = vadd.f32 %v315, %v502
    %v504 = vpop.f32.mrf.mxu0
    %v505 = vadd.f32 %v315, %v504
    %506 = vmatprep.mubr.f32.mxu0 0.0
    %507 = vmatmul.mubr.f32.gmra.mxu0 %v333
    %v508 = vpop.f32.mrf.mxu0
    %v509 = vadd.f32 %v320, %v508
    %v510 = vpop.f32.mrf.mxu0
    %v511 = vadd.f32 %v320, %v510
    %512 = vdwg.mxu0
    %v513 = vmax.f32 %v402, 0.0
    %v514 = vmax.f32 %v404, 0.0
    %v515 = vmax.f32 %v491, 0.0
    %v516 = vmax.f32 %v493, 0.0
    %v517 = vmax.f32 %v408, 0.0
    %v518 = vmax.f32 %v410, 0.0
    %v519 = vmax.f32 %v497, 0.0
    %v520 = vmax.f32 %v499, 0.0
    %v521 = vmax.f32 %v414, 0.0
    %v522 = vmax.f32 %v416, 0.0
    %v523 = vmax.f32 %v503, 0.0
    %v524 = vmax.f32 %v505, 0.0
    %v525 = vmax.f32 %v420, 0.0
    %v526 = vmax.f32 %v422, 0.0
    %v527 = vmax.f32 %v509, 0.0
    %v528 = vmax.f32 %v511, 0.0
    %v529 = vld [vmem:[%s2] sm:$0xff]
    %v530 = vld [vmem:[%s2 + $0x8] sm:$0xff]
    %v531 = vld [vmem:[%s5 + $0x20] sm:$0xff]
    %v532 = vld [vmem:[%s5 + $0x28] sm:$0xff]
    %534 = vset.pattern.permute.xlu0 0
    %535 = vperm.xlu0 %534, %v531
    %v536 = vpop.permute.xlu0 %535
    %539 = vset.pattern.permute.xlu0 0
    %540 = vperm.xlu0 %539, %v532
    %v541 = vpop.permute.xlu0 %540
    %vm543 = vcmask 261120
    %v545 = vsel %vm543, %v529, 0
    %v548 = vsel %vm543, %v530, 0
    %550 = vmatprep.subr.mxu0 0.0
    %551 = vmatpush1.msra.mxu0 0.0
    %552 = vmatprep.subr.mxu0 0.0
    %553 = vmatpush1.msra.mxu0 0.0
    %554 = vmatprep.subr.mxu0 0.0
    %555 = vmatpush1.msra.mxu0 0.0
    %556 = vmatprep.subr.mxu0 0.0
    %557 = vmatpush1.msra.mxu0 0.0
    %558 = vmatprep.subr.mxu0 0.0
    %559 = vmatpush1.msra.mxu0 0.0
    %560 = vmatprep.subr.mxu0 0.0
    %561 = vmatpush1.msra.mxu0 0.0
    %562 = vmatprep.subr.mxu0 0.0
    %563 = vmatpush1.msra.mxu0 0.0
    %564 = vmatprep.subr.mxu0 0.0
    %565 = vmatpush1.msra.mxu0 0.0
    %566 = vmatprep.subr.mxu0 0.0
    %567 = vmatpush1.msra.mxu0 0.0
    %568 = vmatprep.subr.mxu0 0.0
    %569 = vmatpush1.msra.mxu0 0.0
    %570 = vmatprep.subr.mxu0 0.0
    %571 = vmatpush1.msra.mxu0 0.0
    %572 = vmatprep.subr.mxu0 0.0
    %573 = vmatpush1.msra.mxu0 0.0
    %574 = vmatprep.subr.mxu0 %v526
    %575 = vmatpush1.msra.mxu0 %v525
    %576 = vmatprep.subr.mxu0 %v522
    %577 = vmatpush1.msra.mxu0 %v521
    %578 = vmatprep.subr.mxu0 %v518
    %579 = vmatpush1.msra.mxu0 %v517
    %580 = vmatprep.subr.mxu0 %v514
    %581 = vmatpush1.msra.mxu0 %v513
    %582 = vmatprep.subr.mxu0 0.0
    %583 = vmatpush2.msra.mxu0 0.0
    %584 = vmatprep.subr.mxu0 0.0
    %585 = vmatpush2.msra.mxu0 0.0
    %586 = vmatprep.subr.mxu0 0.0
    %587 = vmatpush2.msra.mxu0 0.0
    %588 = vmatprep.subr.mxu0 0.0
    %589 = vmatpush2.msra.mxu0 0.0
    %590 = vmatprep.subr.mxu0 0.0
    %591 = vmatpush2.msra.mxu0 0.0
    %592 = vmatprep.subr.mxu0 0.0
    %593 = vmatpush2.msra.mxu0 0.0
    %594 = vmatprep.subr.mxu0 0.0
    %595 = vmatpush2.msra.mxu0 0.0
    %596 = vmatprep.subr.mxu0 0.0
    %597 = vmatpush2.msra.mxu0 0.0
    %598 = vmatprep.subr.mxu0 0.0
    %599 = vmatpush2.msra.mxu0 0.0
    %600 = vmatprep.subr.mxu0 0.0
    %601 = vmatpush2.msra.mxu0 0.0
    %602 = vmatprep.subr.mxu0 0.0
    %603 = vmatpush2.msra.mxu0 0.0
    %604 = vmatprep.subr.mxu0 0.0
    %605 = vmatpush2.msra.mxu0 0.0
    %606 = vmatprep.subr.mxu0 0.0
    %607 = vmatpush2.msra.mxu0 0.0
    %608 = vmatprep.subr.mxu0 0.0
    %609 = vmatpush2.msra.mxu0 0.0
    %610 = vmatprep.subr.mxu0 0.0
    %611 = vmatpush2.msra.mxu0 0.0
    %612 = vmatprep.subr.mxu0 0.0
    %613 = vmatpush2.msra.mxu0 0.0
    %614 = vmatprep.mubr.f32.mxu0 0.0
    %615 = vmatmul.mubr.f32.gmra.mxu0 %v545
    %v616 = vpop.f32.mrf.mxu0
    %v617 = vadd.f32 %v536, %v616
    %v618 = vpop.f32.mrf.mxu0
    %v619 = vadd.f32 %v536, %v618
    %620 = vmatprep.mubr.f32.mxu0 0.0
    %621 = vmatmul.mubr.f32.gmra.mxu0 %v548
    %v622 = vpop.f32.mrf.mxu0
    %v623 = vadd.f32 %v541, %v622
    %v624 = vpop.f32.mrf.mxu0
    %v625 = vadd.f32 %v541, %v624
    %626 = vdwg.mxu0
    %627 = vmatprep.subr.mxu0 0.0
    %628 = vmatpush1.msra.mxu0 0.0
    %629 = vmatprep.subr.mxu0 0.0
    %630 = vmatpush1.msra.mxu0 0.0
    %631 = vmatprep.subr.mxu0 0.0
    %632 = vmatpush1.msra.mxu0 0.0
    %633 = vmatprep.subr.mxu0 0.0
    %634 = vmatpush1.msra.mxu0 0.0
    %635 = vmatprep.subr.mxu0 0.0
    %636 = vmatpush1.msra.mxu0 0.0
    %637 = vmatprep.subr.mxu0 0.0
    %638 = vmatpush1.msra.mxu0 0.0
    %639 = vmatprep.subr.mxu0 0.0
    %640 = vmatpush1.msra.mxu0 0.0
    %641 = vmatprep.subr.mxu0 0.0
    %642 = vmatpush1.msra.mxu0 0.0
    %643 = vmatprep.subr.mxu0 0.0
    %644 = vmatpush1.msra.mxu0 0.0
    %645 = vmatprep.subr.mxu0 0.0
    %646 = vmatpush1.msra.mxu0 0.0
    %647 = vmatprep.subr.mxu0 0.0
    %648 = vmatpush1.msra.mxu0 0.0
    %649 = vmatprep.subr.mxu0 0.0
    %650 = vmatpush1.msra.mxu0 0.0
    %651 = vmatprep.subr.mxu0 %v528
    %652 = vmatpush1.msra.mxu0 %v527
    %653 = vmatprep.subr.mxu0 %v524
    %654 = vmatpush1.msra.mxu0 %v523
    %655 = vmatprep.subr.mxu0 %v520
    %656 = vmatpush1.msra.mxu0 %v519
    %657 = vmatprep.subr.mxu0 %v516
    %658 = vmatpush1.msra.mxu0 %v515
    %659 = vmatprep.subr.mxu0 0.0
    %660 = vmatpush2.msra.mxu0 0.0
    %661 = vmatprep.subr.mxu0 0.0
    %662 = vmatpush2.msra.mxu0 0.0
    %663 = vmatprep.subr.mxu0 0.0
    %664 = vmatpush2.msra.mxu0 0.0
    %665 = vmatprep.subr.mxu0 0.0
    %666 = vmatpush2.msra.mxu0 0.0
    %667 = vmatprep.subr.mxu0 0.0
    %668 = vmatpush2.msra.mxu0 0.0
    %669 = vmatprep.subr.mxu0 0.0
    %670 = vmatpush2.msra.mxu0 0.0
    %671 = vmatprep.subr.mxu0 0.0
    %672 = vmatpush2.msra.mxu0 0.0
    %673 = vmatprep.subr.mxu0 0.0
    %674 = vmatpush2.msra.mxu0 0.0
    %675 = vmatprep.subr.mxu0 0.0
    %676 = vmatpush2.msra.mxu0 0.0
    %677 = vmatprep.subr.mxu0 0.0
    %678 = vmatpush2.msra.mxu0 0.0
    %679 = vmatprep.subr.mxu0 0.0
    %680 = vmatpush2.msra.mxu0 0.0
    %681 = vmatprep.subr.mxu0 0.0
    %682 = vmatpush2.msra.mxu0 0.0
    %683 = vmatprep.subr.mxu0 0.0
    %684 = vmatpush2.msra.mxu0 0.0
    %685 = vmatprep.subr.mxu0 0.0
    %686 = vmatpush2.msra.mxu0 0.0
    %687 = vmatprep.subr.mxu0 0.0
    %688 = vmatpush2.msra.mxu0 0.0
    %689 = vmatprep.subr.mxu0 0.0
    %690 = vmatpush2.msra.mxu0 0.0
    %691 = vmatprep.mubr.f32.mxu0 0.0
    %692 = vmatmul.mubr.f32.gmra.mxu0 %v545
    %v693 = vpop.f32.mrf.mxu0
    %v694 = vadd.f32 %v536, %v693
    %v695 = vpop.f32.mrf.mxu0
    %v696 = vadd.f32 %v536, %v695
    %697 = vmatprep.mubr.f32.mxu0 0.0
    %698 = vmatmul.mubr.f32.gmra.mxu0 %v548
    %v699 = vpop.f32.mrf.mxu0
    %v700 = vadd.f32 %v541, %v699
    %v701 = vpop.f32.mrf.mxu0
    %v702 = vadd.f32 %v541, %v701
    %703 = vdwg.mxu0
    %v704 = vmax.f32 %v617, 0.0
    %v705 = vmax.f32 %v619, 0.0
    %v706 = vmax.f32 %v694, 0.0
    %v707 = vmax.f32 %v696, 0.0
    %v708 = vmax.f32 %v623, 0.0
    %v709 = vmax.f32 %v625, 0.0
    %v710 = vmax.f32 %v700, 0.0
    %v711 = vmax.f32 %v702, 0.0
    %712 = vrot.lane.b32.xlu0 %v704, 17
    %v713 = vpop.permute.xlu0 %712
    %714 = vrot.lane.b32.xlu0 %v708, 17
    %v715 = vpop.permute.xlu0 %714
    %716 = vrot.lane.b32.xlu0 %v705, 17
    %v717 = vpop.permute.xlu0 %716
    %718 = vrot.lane.b32.xlu0 %v709, 17
    %v719 = vpop.permute.xlu0 %718
    %720 = vrot.lane.b32.xlu0 %v706, 17
    %v721 = vpop.permute.xlu0 %720
    %722 = vrot.lane.b32.xlu0 %v710, 17
    %v723 = vpop.permute.xlu0 %722
    %724 = vrot.lane.b32.xlu0 %v707, 17
    %v725 = vpop.permute.xlu0 %724
    %726 = vrot.lane.b32.xlu0 %v711, 17
    %v727 = vpop.permute.xlu0 %726
    %v728 = vsel %vm54, %v721, %v725
    %v729 = vsel %vm54, %v723, %v727
    %v730 = vsel %vm54, %v717, %v721
    %v731 = vsel %vm54, %v719, %v723
    %v732 = vsel %vm54, %v713, %v717
    %v733 = vsel %vm54, %v715, %v719
    %v734 = vsel %vm54, %v725, %v713
    %v735 = vsel %vm54, %v727, %v715
    %v736 = vld [vmem:[#allocation4 + $0x120] sm:$0xff]
    %v737 = vld [vmem:[#allocation4 + $0x128] sm:$0xff]
    %v738 = vld [vmem:[#allocation4 + $0x130] sm:$0xff]
    %v739 = vld [vmem:[#allocation4 + $0x138] sm:$0xff]
    %v740 = vld [vmem:[#allocation4 + $0x140] sm:$0xff]
    %v741 = vld [vmem:[#allocation4 + $0x148] sm:$0xff]
    %v742 = vld [vmem:[#allocation4 + $0x150] sm:$0xff]
    %v743 = vld [vmem:[#allocation4 + $0x158] sm:$0xff]
    %v744 = vmul.f32 %v734, %v736
    %v745 = vmul.f32 %v732, %v737
    %v746 = vmul.f32 %v730, %v738
    %v747 = vmul.f32 %v728, %v739
    %v748 = vmul.f32 %v735, %v740
    %v749 = vmul.f32 %v733, %v741
    %v750 = vmul.f32 %v731, %v742
    %v751 = vmul.f32 %v729, %v743
    %752 = vst [vmem:[#allocation3] sm:$0xff] %v744
    %753 = vst [vmem:[#allocation3 + $0x8] sm:$0xff] %v745
    %754 = vst [vmem:[#allocation3 + $0x10] sm:$0xff] %v746
    %755 = vst [vmem:[#allocation3 + $0x18] sm:$0xff] %v747
    %756 = vst [vmem:[#allocation3 + $0x20] sm:$0xff] %v748
    %757 = vst [vmem:[#allocation3 + $0x28] sm:$0xff] %v749
    %758 = vst [vmem:[#allocation3 + $0x30] sm:$0xff] %v750
    %759 = vst [vmem:[#allocation3 + $0x38] sm:$0xff] %v751
    %760 = vrot.lane.b32.xlu0 %v704, 16
    %v761 = vpop.permute.xlu0 %760
    %762 = vrot.lane.b32.xlu0 %v708, 16
    %v763 = vpop.permute.xlu0 %762
    %764 = vrot.lane.b32.xlu0 %v705, 16
    %v765 = vpop.permute.xlu0 %764
    %766 = vrot.lane.b32.xlu0 %v709, 16
    %v767 = vpop.permute.xlu0 %766
    %768 = vrot.lane.b32.xlu0 %v706, 16
    %v769 = vpop.permute.xlu0 %768
    %770 = vrot.lane.b32.xlu0 %v710, 16
    %v771 = vpop.permute.xlu0 %770
    %772 = vrot.lane.b32.xlu0 %v707, 16
    %v773 = vpop.permute.xlu0 %772
    %774 = vrot.lane.b32.xlu0 %v711, 16
    %v775 = vpop.permute.xlu0 %774
    %v776 = vsel %vm79, %v769, %v773
    %v777 = vsel %vm79, %v771, %v775
    %v778 = vsel %vm79, %v765, %v769
    %v779 = vsel %vm79, %v767, %v771
    %v780 = vsel %vm79, %v761, %v765
    %v781 = vsel %vm79, %v763, %v767
    %v782 = vsel %vm79, %v773, %v761
    %v783 = vsel %vm79, %v775, %v763
    %v784 = vld [vmem:[#allocation4 + $0x160] sm:$0xff]
    %v785 = vld [vmem:[#allocation4 + $0x168] sm:$0xff]
    %v786 = vld [vmem:[#allocation4 + $0x170] sm:$0xff]
    %v787 = vld [vmem:[#allocation4 + $0x178] sm:$0xff]
    %v788 = vld [vmem:[#allocation4 + $0x180] sm:$0xff]
    %v789 = vld [vmem:[#allocation4 + $0x188] sm:$0xff]
    %v790 = vld [vmem:[#allocation4 + $0x190] sm:$0xff]
    %v791 = vld [vmem:[#allocation4 + $0x198] sm:$0xff]
    %v792 = vmul.f32 %v782, %v784
    %v793 = vmul.f32 %v780, %v785
    %v794 = vmul.f32 %v778, %v786
    %v795 = vmul.f32 %v776, %v787
    %v796 = vmul.f32 %v783, %v788
    %v797 = vmul.f32 %v781, %v789
    %v798 = vmul.f32 %v779, %v790
    %v799 = vmul.f32 %v777, %v791
    %800 = vst [vmem:[#allocation3 + $0x40] sm:$0xff] %v792
    %801 = vst [vmem:[#allocation3 + $0x48] sm:$0xff] %v793
    %802 = vst [vmem:[#allocation3 + $0x50] sm:$0xff] %v794
    %803 = vst [vmem:[#allocation3 + $0x58] sm:$0xff] %v795
    %804 = vst [vmem:[#allocation3 + $0x60] sm:$0xff] %v796
    %805 = vst [vmem:[#allocation3 + $0x68] sm:$0xff] %v797
    %806 = vst [vmem:[#allocation3 + $0x70] sm:$0xff] %v798
    %807 = vst [vmem:[#allocation3 + $0x78] sm:$0xff] %v799
    %808 = vrot.lane.b32.xlu0 %v704, 15
    %v809 = vpop.permute.xlu0 %808
    %810 = vrot.lane.b32.xlu0 %v708, 15
    %v811 = vpop.permute.xlu0 %810
    %812 = vrot.lane.b32.xlu0 %v705, 15
    %v813 = vpop.permute.xlu0 %812
    %814 = vrot.lane.b32.xlu0 %v709, 15
    %v815 = vpop.permute.xlu0 %814
    %816 = vrot.lane.b32.xlu0 %v706, 15
    %v817 = vpop.permute.xlu0 %816
    %818 = vrot.lane.b32.xlu0 %v710, 15
    %v819 = vpop.permute.xlu0 %818
    %820 = vrot.lane.b32.xlu0 %v707, 15
    %v821 = vpop.permute.xlu0 %820
    %822 = vrot.lane.b32.xlu0 %v711, 15
    %v823 = vpop.permute.xlu0 %822
    %v824 = vsel %vm104, %v817, %v821
    %v825 = vsel %vm104, %v819, %v823
    %v826 = vsel %vm104, %v813, %v817
    %v827 = vsel %vm104, %v815, %v819
    %v828 = vsel %vm104, %v809, %v813
    %v829 = vsel %vm104, %v811, %v815
    %v830 = vsel %vm104, %v821, %v809
    %v831 = vsel %vm104, %v823, %v811
    %v832 = vld [vmem:[#allocation4 + $0x1a0] sm:$0xff]
    %v833 = vld [vmem:[#allocation4 + $0x1a8] sm:$0xff]
    %v834 = vld [vmem:[#allocation4 + $0x1b0] sm:$0xff]
    %v835 = vld [vmem:[#allocation4 + $0x1b8] sm:$0xff]
    %v836 = vld [vmem:[#allocation4 + $0x1c0] sm:$0xff]
    %v837 = vld [vmem:[#allocation4 + $0x1c8] sm:$0xff]
    %v838 = vld [vmem:[#allocation4 + $0x1d0] sm:$0xff]
    %v839 = vld [vmem:[#allocation4 + $0x1d8] sm:$0xff]
    %v840 = vmul.f32 %v830, %v832
    %v841 = vmul.f32 %v828, %v833
    %v842 = vmul.f32 %v826, %v834
    %v843 = vmul.f32 %v824, %v835
    %v844 = vmul.f32 %v831, %v836
    %v845 = vmul.f32 %v829, %v837
    %v846 = vmul.f32 %v827, %v838
    %v847 = vmul.f32 %v825, %v839
    %848 = vst [vmem:[#allocation3 + $0x80] sm:$0xff] %v840
    %849 = vst [vmem:[#allocation3 + $0x88] sm:$0xff] %v841
    %850 = vst [vmem:[#allocation3 + $0x90] sm:$0xff] %v842
    %851 = vst [vmem:[#allocation3 + $0x98] sm:$0xff] %v843
    %852 = vst [vmem:[#allocation3 + $0xa0] sm:$0xff] %v844
    %853 = vst [vmem:[#allocation3 + $0xa8] sm:$0xff] %v845
    %854 = vst [vmem:[#allocation3 + $0xb0] sm:$0xff] %v846
    %855 = vst [vmem:[#allocation3 + $0xb8] sm:$0xff] %v847
    %856 = vrot.lane.b32.xlu0 %v704, 1
    %v857 = vpop.permute.xlu0 %856
    %858 = vrot.lane.b32.xlu0 %v708, 1
    %v859 = vpop.permute.xlu0 %858
    %860 = vrot.lane.b32.xlu0 %v705, 1
    %v861 = vpop.permute.xlu0 %860
    %862 = vrot.lane.b32.xlu0 %v709, 1
    %v863 = vpop.permute.xlu0 %862
    %864 = vrot.lane.b32.xlu0 %v706, 1
    %v865 = vpop.permute.xlu0 %864
    %866 = vrot.lane.b32.xlu0 %v710, 1
    %v867 = vpop.permute.xlu0 %866
    %868 = vrot.lane.b32.xlu0 %v707, 1
    %v869 = vpop.permute.xlu0 %868
    %870 = vrot.lane.b32.xlu0 %v711, 1
    %v871 = vpop.permute.xlu0 %870
    %v872 = vsel %vm129, %v865, %v869
    %v873 = vsel %vm129, %v867, %v871
    %v874 = vsel %vm129, %v861, %v865
    %v875 = vsel %vm129, %v863, %v867
    %v876 = vsel %vm129, %v857, %v861
    %v877 = vsel %vm129, %v859, %v863
    %v878 = vsel %vm129, %v869, %v857
    %v879 = vsel %vm129, %v871, %v859
    %v880 = vld [vmem:[#allocation4 + $0x1e0] sm:$0xff]
    %v881 = vld [vmem:[#allocation4 + $0x1e8] sm:$0xff]
    %v882 = vld [vmem:[#allocation4 + $0x1f0] sm:$0xff]
    %v883 = vld [vmem:[#allocation4 + $0x1f8] sm:$0xff]
    %v884 = vld [vmem:[#allocation4 + $0x200] sm:$0xff]
    %v885 = vld [vmem:[#allocation4 + $0x208] sm:$0xff]
    %v886 = vld [vmem:[#allocation4 + $0x210] sm:$0xff]
    %v887 = vld [vmem:[#allocation4 + $0x218] sm:$0xff]
    %v888 = vmul.f32 %v878, %v880
    %v889 = vmul.f32 %v876, %v881
    %v890 = vmul.f32 %v874, %v882
    %v891 = vmul.f32 %v872, %v883
    %v892 = vmul.f32 %v879, %v884
    %v893 = vmul.f32 %v877, %v885
    %v894 = vmul.f32 %v875, %v886
    %v895 = vmul.f32 %v873, %v887
    %896 = vst [vmem:[#allocation3 + $0xc0] sm:$0xff] %v888
    %897 = vst [vmem:[#allocation3 + $0xc8] sm:$0xff] %v889
    %898 = vst [vmem:[#allocation3 + $0xd0] sm:$0xff] %v890
    %899 = vst [vmem:[#allocation3 + $0xd8] sm:$0xff] %v891
    %900 = vst [vmem:[#allocation3 + $0xe0] sm:$0xff] %v892
    %901 = vst [vmem:[#allocation3 + $0xe8] sm:$0xff] %v893
    %902 = vst [vmem:[#allocation3 + $0xf0] sm:$0xff] %v894
    %903 = vst [vmem:[#allocation3 + $0xf8] sm:$0xff] %v895
    %v904 = vld [vmem:[#allocation4 + $0x220] sm:$0xff]
    %v905 = vld [vmem:[#allocation4 + $0x228] sm:$0xff]
    %v906 = vld [vmem:[#allocation4 + $0x230] sm:$0xff]
    %v907 = vld [vmem:[#allocation4 + $0x238] sm:$0xff]
    %v908 = vld [vmem:[#allocation4 + $0x240] sm:$0xff]
    %v909 = vld [vmem:[#allocation4 + $0x248] sm:$0xff]
    %v910 = vld [vmem:[#allocation4 + $0x250] sm:$0xff]
    %v911 = vld [vmem:[#allocation4 + $0x258] sm:$0xff]
    %v912 = vmul.f32 %v704, %v904
    %v913 = vmul.f32 %v705, %v905
    %v914 = vmul.f32 %v706, %v906
    %v915 = vmul.f32 %v707, %v907
    %v916 = vmul.f32 %v708, %v908
    %v917 = vmul.f32 %v709, %v909
    %v918 = vmul.f32 %v710, %v910
    %v919 = vmul.f32 %v711, %v911
    %920 = vst [vmem:[#allocation3 + $0x100] sm:$0xff] %v912
    %921 = vst [vmem:[#allocation3 + $0x108] sm:$0xff] %v913
    %922 = vst [vmem:[#allocation3 + $0x110] sm:$0xff] %v914
    %923 = vst [vmem:[#allocation3 + $0x118] sm:$0xff] %v915
    %924 = vst [vmem:[#allocation3 + $0x120] sm:$0xff] %v916
    %925 = vst [vmem:[#allocation3 + $0x128] sm:$0xff] %v917
    %926 = vst [vmem:[#allocation3 + $0x130] sm:$0xff] %v918
    %927 = vst [vmem:[#allocation3 + $0x138] sm:$0xff] %v919
    %928 = vrot.lane.b32.xlu0 %v704, 127
    %v929 = vpop.permute.xlu0 %928
    %930 = vrot.lane.b32.xlu0 %v708, 127
    %v931 = vpop.permute.xlu0 %930
    %932 = vrot.lane.b32.xlu0 %v705, 127
    %v933 = vpop.permute.xlu0 %932
    %934 = vrot.lane.b32.xlu0 %v709, 127
    %v935 = vpop.permute.xlu0 %934
    %936 = vrot.lane.b32.xlu0 %v706, 127
    %v937 = vpop.permute.xlu0 %936
    %938 = vrot.lane.b32.xlu0 %v710, 127
    %v939 = vpop.permute.xlu0 %938
    %940 = vrot.lane.b32.xlu0 %v707, 127
    %v941 = vpop.permute.xlu0 %940
    %942 = vrot.lane.b32.xlu0 %v711, 127
    %v943 = vpop.permute.xlu0 %942
    %v944 = vsel %vm166, %v937, %v941
    %v945 = vsel %vm166, %v939, %v943
    %v946 = vsel %vm166, %v933, %v937
    %v947 = vsel %vm166, %v935, %v939
    %v948 = vsel %vm166, %v929, %v933
    %v949 = vsel %vm166, %v931, %v935
    %v950 = vsel %vm166, %v941, %v929
    %v951 = vsel %vm166, %v943, %v931
    %v952 = vld [vmem:[#allocation4 + $0x260] sm:$0xff]
    %v953 = vld [vmem:[#allocation4 + $0x268] sm:$0xff]
    %v954 = vld [vmem:[#allocation4 + $0x270] sm:$0xff]
    %v955 = vld [vmem:[#allocation4 + $0x278] sm:$0xff]
    %v956 = vld [vmem:[#allocation4 + $0x280] sm:$0xff]
    %v957 = vld [vmem:[#allocation4 + $0x288] sm:$0xff]
    %v958 = vld [vmem:[#allocation4 + $0x290] sm:$0xff]
    %v959 = vld [vmem:[#allocation4 + $0x298] sm:$0xff]
    %v960 = vmul.f32 %v948, %v952
    %v961 = vmul.f32 %v946, %v953
    %v962 = vmul.f32 %v944, %v954
    %v963 = vmul.f32 %v950, %v955
    %v964 = vmul.f32 %v949, %v956
    %v965 = vmul.f32 %v947, %v957
    %v966 = vmul.f32 %v945, %v958
    %v967 = vmul.f32 %v951, %v959
    %968 = vst [vmem:[#allocation3 + $0x140] sm:$0xff] %v960
    %969 = vst [vmem:[#allocation3 + $0x148] sm:$0xff] %v961
    %970 = vst [vmem:[#allocation3 + $0x150] sm:$0xff] %v962
    %971 = vst [vmem:[#allocation3 + $0x158] sm:$0xff] %v963
    %972 = vst [vmem:[#allocation3 + $0x160] sm:$0xff] %v964
    %973 = vst [vmem:[#allocation3 + $0x168] sm:$0xff] %v965
    %974 = vst [vmem:[#allocation3 + $0x170] sm:$0xff] %v966
    %975 = vst [vmem:[#allocation3 + $0x178] sm:$0xff] %v967
    %976 = vrot.lane.b32.xlu0 %v704, 113
    %v977 = vpop.permute.xlu0 %976
    %978 = vrot.lane.b32.xlu0 %v708, 113
    %v979 = vpop.permute.xlu0 %978
    %980 = vrot.lane.b32.xlu0 %v705, 113
    %v981 = vpop.permute.xlu0 %980
    %982 = vrot.lane.b32.xlu0 %v709, 113
    %v983 = vpop.permute.xlu0 %982
    %984 = vrot.lane.b32.xlu0 %v706, 113
    %v985 = vpop.permute.xlu0 %984
    %986 = vrot.lane.b32.xlu0 %v710, 113
    %v987 = vpop.permute.xlu0 %986
    %988 = vrot.lane.b32.xlu0 %v707, 113
    %v989 = vpop.permute.xlu0 %988
    %990 = vrot.lane.b32.xlu0 %v711, 113
    %v991 = vpop.permute.xlu0 %990
    %v992 = vsel %vm191, %v985, %v989
    %v993 = vsel %vm191, %v987, %v991
    %v994 = vsel %vm191, %v981, %v985
    %v995 = vsel %vm191, %v983, %v987
    %v996 = vsel %vm191, %v977, %v981
    %v997 = vsel %vm191, %v979, %v983
    %v998 = vsel %vm191, %v989, %v977
    %v999 = vsel %vm191, %v991, %v979
    %v1000 = vld [vmem:[#allocation4 + $0x2a0] sm:$0xff]
    %v1001 = vld [vmem:[#allocation4 + $0x2a8] sm:$0xff]
    %v1002 = vld [vmem:[#allocation4 + $0x2b0] sm:$0xff]
    %v1003 = vld [vmem:[#allocation4 + $0x2b8] sm:$0xff]
    %v1004 = vld [vmem:[#allocation4 + $0x2c0] sm:$0xff]
    %v1005 = vld [vmem:[#allocation4 + $0x2c8] sm:$0xff]
    %v1006 = vld [vmem:[#allocation4 + $0x2d0] sm:$0xff]
    %v1007 = vld [vmem:[#allocation4 + $0x2d8] sm:$0xff]
    %v1008 = vmul.f32 %v996, %v1000
    %v1009 = vmul.f32 %v994, %v1001
    %v1010 = vmul.f32 %v992, %v1002
    %v1011 = vmul.f32 %v998, %v1003
    %v1012 = vmul.f32 %v997, %v1004
    %v1013 = vmul.f32 %v995, %v1005
    %v1014 = vmul.f32 %v993, %v1006
    %v1015 = vmul.f32 %v999, %v1007
    %1016 = vst [vmem:[#allocation3 + $0x180] sm:$0xff] %v1008
    %1017 = vst [vmem:[#allocation3 + $0x188] sm:$0xff] %v1009
    %1018 = vst [vmem:[#allocation3 + $0x190] sm:$0xff] %v1010
    %1019 = vst [vmem:[#allocation3 + $0x198] sm:$0xff] %v1011
    %1020 = vst [vmem:[#allocation3 + $0x1a0] sm:$0xff] %v1012
    %1021 = vst [vmem:[#allocation3 + $0x1a8] sm:$0xff] %v1013
    %1022 = vst [vmem:[#allocation3 + $0x1b0] sm:$0xff] %v1014
    %1023 = vst [vmem:[#allocation3 + $0x1b8] sm:$0xff] %v1015
    %1024 = vrot.lane.b32.xlu0 %v704, 112
    %v1025 = vpop.permute.xlu0 %1024
    %1026 = vrot.lane.b32.xlu0 %v708, 112
    %v1027 = vpop.permute.xlu0 %1026
    %1028 = vrot.lane.b32.xlu0 %v705, 112
    %v1029 = vpop.permute.xlu0 %1028
    %1030 = vrot.lane.b32.xlu0 %v709, 112
    %v1031 = vpop.permute.xlu0 %1030
    %1032 = vrot.lane.b32.xlu0 %v706, 112
    %v1033 = vpop.permute.xlu0 %1032
    %1034 = vrot.lane.b32.xlu0 %v710, 112
    %v1035 = vpop.permute.xlu0 %1034
    %1036 = vrot.lane.b32.xlu0 %v707, 112
    %v1037 = vpop.permute.xlu0 %1036
    %1038 = vrot.lane.b32.xlu0 %v711, 112
    %v1039 = vpop.permute.xlu0 %1038
    %v1040 = vsel %vm216, %v1033, %v1037
    %v1041 = vsel %vm216, %v1035, %v1039
    %v1042 = vsel %vm216, %v1029, %v1033
    %v1043 = vsel %vm216, %v1031, %v1035
    %v1044 = vsel %vm216, %v1025, %v1029
    %v1045 = vsel %vm216, %v1027, %v1031
    %v1046 = vsel %vm216, %v1037, %v1025
    %v1047 = vsel %vm216, %v1039, %v1027
    %v1048 = vld [vmem:[#allocation4 + $0x2e0] sm:$0xff]
    %v1049 = vld [vmem:[#allocation4 + $0x2e8] sm:$0xff]
    %v1050 = vld [vmem:[#allocation4 + $0x2f0] sm:$0xff]
    %v1051 = vld [vmem:[#allocation4 + $0x2f8] sm:$0xff]
    %v1052 = vld [vmem:[#allocation4 + $0x300] sm:$0xff]
    %v1053 = vld [vmem:[#allocation4 + $0x308] sm:$0xff]
    %v1054 = vld [vmem:[#allocation4 + $0x310] sm:$0xff]
    %v1055 = vld [vmem:[#allocation4 + $0x318] sm:$0xff]
    %v1056 = vmul.f32 %v1044, %v1048
    %v1057 = vmul.f32 %v1042, %v1049
    %v1058 = vmul.f32 %v1040, %v1050
    %v1059 = vmul.f32 %v1046, %v1051
    %v1060 = vmul.f32 %v1045, %v1052
    %v1061 = vmul.f32 %v1043, %v1053
    %v1062 = vmul.f32 %v1041, %v1054
    %v1063 = vmul.f32 %v1047, %v1055
    %1064 = vst [vmem:[#allocation3 + $0x1c0] sm:$0xff] %v1056
    %1065 = vst [vmem:[#allocation3 + $0x1c8] sm:$0xff] %v1057
    %1066 = vst [vmem:[#allocation3 + $0x1d0] sm:$0xff] %v1058
    %1067 = vst [vmem:[#allocation3 + $0x1d8] sm:$0xff] %v1059
    %1068 = vst [vmem:[#allocation3 + $0x1e0] sm:$0xff] %v1060
    %1069 = vst [vmem:[#allocation3 + $0x1e8] sm:$0xff] %v1061
    %1070 = vst [vmem:[#allocation3 + $0x1f0] sm:$0xff] %v1062
    %1071 = vst [vmem:[#allocation3 + $0x1f8] sm:$0xff] %v1063
    %1072 = vrot.lane.b32.xlu0 %v704, 111
    %v1073 = vpop.permute.xlu0 %1072
    %1074 = vrot.lane.b32.xlu0 %v708, 111
    %v1075 = vpop.permute.xlu0 %1074
    %1076 = vrot.lane.b32.xlu0 %v705, 111
    %v1077 = vpop.permute.xlu0 %1076
    %1078 = vrot.lane.b32.xlu0 %v709, 111
    %v1079 = vpop.permute.xlu0 %1078
    %1080 = vrot.lane.b32.xlu0 %v706, 111
    %v1081 = vpop.permute.xlu0 %1080
    %1082 = vrot.lane.b32.xlu0 %v710, 111
    %v1083 = vpop.permute.xlu0 %1082
    %1084 = vrot.lane.b32.xlu0 %v707, 111
    %v1085 = vpop.permute.xlu0 %1084
    %1086 = vrot.lane.b32.xlu0 %v711, 111
    %v1087 = vpop.permute.xlu0 %1086
    %v1088 = vsel %vm241, %v1081, %v1085
    %v1089 = vsel %vm241, %v1083, %v1087
    %v1090 = vsel %vm241, %v1077, %v1081
    %v1091 = vsel %vm241, %v1079, %v1083
    %v1092 = vsel %vm241, %v1073, %v1077
    %v1093 = vsel %vm241, %v1075, %v1079
    %v1094 = vsel %vm241, %v1085, %v1073
    %v1095 = vsel %vm241, %v1087, %v1075
    %v1096 = vld [vmem:[#allocation4 + $0x320] sm:$0xff]
    %v1097 = vld [vmem:[#allocation4 + $0x328] sm:$0xff]
    %v1098 = vld [vmem:[#allocation4 + $0x330] sm:$0xff]
    %v1099 = vld [vmem:[#allocation4 + $0x338] sm:$0xff]
    %v1100 = vld [vmem:[#allocation4 + $0x340] sm:$0xff]
    %v1101 = vld [vmem:[#allocation4 + $0x348] sm:$0xff]
    %v1102 = vld [vmem:[#allocation4 + $0x350] sm:$0xff]
    %v1103 = vld [vmem:[#allocation4 + $0x358] sm:$0xff]
    %v1104 = vmul.f32 %v1092, %v1096
    %v1105 = vmul.f32 %v1090, %v1097
    %v1106 = vmul.f32 %v1088, %v1098
    %v1107 = vmul.f32 %v1094, %v1099
    %v1108 = vmul.f32 %v1093, %v1100
    %v1109 = vmul.f32 %v1091, %v1101
    %v1110 = vmul.f32 %v1089, %v1102
    %v1111 = vmul.f32 %v1095, %v1103
    %1112 = vst [vmem:[#allocation3 + $0x200] sm:$0xff] %v1104
    %1113 = vst [vmem:[#allocation3 + $0x208] sm:$0xff] %v1105
    %1114 = vst [vmem:[#allocation3 + $0x210] sm:$0xff] %v1106
    %1115 = vst [vmem:[#allocation3 + $0x218] sm:$0xff] %v1107
    %1116 = vst [vmem:[#allocation3 + $0x220] sm:$0xff] %v1108
    %1117 = vst [vmem:[#allocation3 + $0x228] sm:$0xff] %v1109
    %1118 = vst [vmem:[#allocation3 + $0x230] sm:$0xff] %v1110
    %1119 = vst [vmem:[#allocation3 + $0x238] sm:$0xff] %v1111
    %v1120 = vld [vmem:[%s3] sm:$0xff]
    %v1121 = vld [vmem:[%s3 + $0x8] sm:$0xff]
    %v1122 = vld [vmem:[%s3 + $0x10] sm:$0xff]
    %v1123 = vld [vmem:[%s3 + $0x18] sm:$0xff]
    %v1124 = vld [vmem:[%s3 + $0x20] sm:$0xff]
    %v1125 = vld [vmem:[%s3 + $0x28] sm:$0xff]
    %v1126 = vld [vmem:[%s3 + $0x30] sm:$0xff]
    %v1127 = vld [vmem:[%s3 + $0x38] sm:$0xff]
    %v1128 = vld [vmem:[#allocation3] sm:$0xff]
    %v1129 = vld [vmem:[#allocation3 + $0x8] sm:$0xff]
    %v1130 = vld [vmem:[#allocation3 + $0x10] sm:$0xff]
    %v1131 = vld [vmem:[#allocation3 + $0x18] sm:$0xff]
    %v1132 = vld [vmem:[#allocation3 + $0x20] sm:$0xff]
    %v1133 = vld [vmem:[#allocation3 + $0x28] sm:$0xff]
    %v1134 = vld [vmem:[#allocation3 + $0x30] sm:$0xff]
    %v1135 = vld [vmem:[#allocation3 + $0x38] sm:$0xff]
    %v1136 = vld [vmem:[#allocation3 + $0x40] sm:$0xff]
    %v1137 = vld [vmem:[#allocation3 + $0x48] sm:$0xff]
    %v1138 = vld [vmem:[#allocation3 + $0x50] sm:$0xff]
    %v1139 = vld [vmem:[#allocation3 + $0x58] sm:$0xff]
    %v1140 = vld [vmem:[#allocation3 + $0x60] sm:$0xff]
    %v1141 = vld [vmem:[#allocation3 + $0x68] sm:$0xff]
    %v1142 = vld [vmem:[#allocation3 + $0x70] sm:$0xff]
    %v1143 = vld [vmem:[#allocation3 + $0x78] sm:$0xff]
    %v1144 = vld [vmem:[#allocation3 + $0x80] sm:$0xff]
    %v1145 = vld [vmem:[#allocation3 + $0x88] sm:$0xff]
    %v1146 = vld [vmem:[#allocation3 + $0x90] sm:$0xff]
    %v1147 = vld [vmem:[#allocation3 + $0x98] sm:$0xff]
    %v1148 = vld [vmem:[#allocation3 + $0xa0] sm:$0xff]
    %v1149 = vld [vmem:[#allocation3 + $0xa8] sm:$0xff]
    %v1150 = vld [vmem:[#allocation3 + $0xb0] sm:$0xff]
    %v1151 = vld [vmem:[#allocation3 + $0xb8] sm:$0xff]
    %v1152 = vld [vmem:[#allocation3 + $0xc0] sm:$0xff]
    %v1153 = vld [vmem:[#allocation3 + $0xc8] sm:$0xff]
    %v1154 = vld [vmem:[#allocation3 + $0xd0] sm:$0xff]
    %v1155 = vld [vmem:[#allocation3 + $0xd8] sm:$0xff]
    %v1156 = vld [vmem:[#allocation3 + $0xe0] sm:$0xff]
    %v1157 = vld [vmem:[#allocation3 + $0xe8] sm:$0xff]
    %v1158 = vld [vmem:[#allocation3 + $0xf0] sm:$0xff]
    %v1159 = vld [vmem:[#allocation3 + $0xf8] sm:$0xff]
    %v1160 = vld [vmem:[#allocation3 + $0x100] sm:$0xff]
    %v1161 = vld [vmem:[#allocation3 + $0x108] sm:$0xff]
    %v1162 = vld [vmem:[#allocation3 + $0x110] sm:$0xff]
    %v1163 = vld [vmem:[#allocation3 + $0x118] sm:$0xff]
    %v1164 = vld [vmem:[#allocation3 + $0x120] sm:$0xff]
    %v1165 = vld [vmem:[#allocation3 + $0x128] sm:$0xff]
    %v1166 = vld [vmem:[#allocation3 + $0x130] sm:$0xff]
    %v1167 = vld [vmem:[#allocation3 + $0x138] sm:$0xff]
    %v1168 = vld [vmem:[#allocation3 + $0x140] sm:$0xff]
    %v1169 = vld [vmem:[#allocation3 + $0x148] sm:$0xff]
    %v1170 = vld [vmem:[#allocation3 + $0x150] sm:$0xff]
    %v1171 = vld [vmem:[#allocation3 + $0x158] sm:$0xff]
    %v1172 = vld [vmem:[#allocation3 + $0x160] sm:$0xff]
    %v1173 = vld [vmem:[#allocation3 + $0x168] sm:$0xff]
    %v1174 = vld [vmem:[#allocation3 + $0x170] sm:$0xff]
    %v1175 = vld [vmem:[#allocation3 + $0x178] sm:$0xff]
    %v1176 = vld [vmem:[#allocation3 + $0x180] sm:$0xff]
    %v1177 = vld [vmem:[#allocation3 + $0x188] sm:$0xff]
    %v1178 = vld [vmem:[#allocation3 + $0x190] sm:$0xff]
    %v1179 = vld [vmem:[#allocation3 + $0x198] sm:$0xff]
    %v1180 = vld [vmem:[#allocation3 + $0x1a0] sm:$0xff]
    %v1181 = vld [vmem:[#allocation3 + $0x1a8] sm:$0xff]
    %v1182 = vld [vmem:[#allocation3 + $0x1b0] sm:$0xff]
    %v1183 = vld [vmem:[#allocation3 + $0x1b8] sm:$0xff]
    %v1184 = vld [vmem:[#allocation3 + $0x1c0] sm:$0xff]
    %v1185 = vld [vmem:[#allocation3 + $0x1c8] sm:$0xff]
    %v1186 = vld [vmem:[#allocation3 + $0x1d0] sm:$0xff]
    %v1187 = vld [vmem:[#allocation3 + $0x1d8] sm:$0xff]
    %v1188 = vld [vmem:[#allocation3 + $0x1e0] sm:$0xff]
    %v1189 = vld [vmem:[#allocation3 + $0x1e8] sm:$0xff]
    %v1190 = vld [vmem:[#allocation3 + $0x1f0] sm:$0xff]
    %v1191 = vld [vmem:[#allocation3 + $0x1f8] sm:$0xff]
    %v1192 = vld [vmem:[#allocation3 + $0x200] sm:$0xff]
    %v1193 = vld [vmem:[#allocation3 + $0x208] sm:$0xff]
    %v1194 = vld [vmem:[#allocation3 + $0x210] sm:$0xff]
    %v1195 = vld [vmem:[#allocation3 + $0x218] sm:$0xff]
    %v1196 = vld [vmem:[#allocation3 + $0x220] sm:$0xff]
    %v1197 = vld [vmem:[#allocation3 + $0x228] sm:$0xff]
    %v1198 = vld [vmem:[#allocation3 + $0x230] sm:$0xff]
    %v1199 = vld [vmem:[#allocation3 + $0x238] sm:$0xff]
    %v1200 = vld [vmem:[%s5 + $0x30] sm:$0xff]
    %v1201 = vld [vmem:[%s5 + $0x38] sm:$0xff]
    %v1202 = vld [vmem:[%s5 + $0x40] sm:$0xff]
    %v1203 = vld [vmem:[%s5 + $0x48] sm:$0xff]
    %1205 = vset.pattern.permute.xlu0 0
    %1206 = vperm.xlu0 %1205, %v1200
    %v1207 = vpop.permute.xlu0 %1206
    %1210 = vset.pattern.permute.xlu0 0
    %1211 = vperm.xlu0 %1210, %v1201
    %v1212 = vpop.permute.xlu0 %1211
    %1215 = vset.pattern.permute.xlu0 0
    %1216 = vperm.xlu0 %1215, %v1202
    %v1217 = vpop.permute.xlu0 %1216
    %1220 = vset.pattern.permute.xlu0 0
    %1221 = vperm.xlu0 %1220, %v1203
    %v1222 = vpop.permute.xlu0 %1221
    %vm1224 = vcmask 130048
    %v1226 = vsel %vm1224, %v1121, 0
    %v1229 = vsel %vm1224, %v1123, 0
    %v1232 = vsel %vm1224, %v1125, 0
    %v1235 = vsel %vm1224, %v1127, 0
    %1237 = vmatprep.subr.mxu0 %v1189
    %1238 = vmatpush1.msra.mxu0 %v1188
    %1239 = vmatprep.subr.mxu0 %v1185
    %1240 = vmatpush1.msra.mxu0 %v1184
    %1241 = vmatprep.subr.mxu0 %v1181
    %1242 = vmatpush1.msra.mxu0 %v1180
    %1243 = vmatprep.subr.mxu0 %v1177
    %1244 = vmatpush1.msra.mxu0 %v1176
    %1245 = vmatprep.subr.mxu0 %v1173
    %1246 = vmatpush1.msra.mxu0 %v1172
    %1247 = vmatprep.subr.mxu0 %v1169
    %1248 = vmatpush1.msra.mxu0 %v1168
    %1249 = vmatprep.subr.mxu0 %v1165
    %1250 = vmatpush1.msra.mxu0 %v1164
    %1251 = vmatprep.subr.mxu0 %v1161
    %1252 = vmatpush1.msra.mxu0 %v1160
    %1253 = vmatprep.subr.mxu0 %v1157
    %1254 = vmatpush1.msra.mxu0 %v1156
    %1255 = vmatprep.subr.mxu0 %v1153
    %1256 = vmatpush1.msra.mxu0 %v1152
    %1257 = vmatprep.subr.mxu0 %v1149
    %1258 = vmatpush1.msra.mxu0 %v1148
    %1259 = vmatprep.subr.mxu0 %v1145
    %1260 = vmatpush1.msra.mxu0 %v1144
    %1261 = vmatprep.subr.mxu0 %v1141
    %1262 = vmatpush1.msra.mxu0 %v1140
    %1263 = vmatprep.subr.mxu0 %v1137
    %1264 = vmatpush1.msra.mxu0 %v1136
    %1265 = vmatprep.subr.mxu0 %v1133
    %1266 = vmatpush1.msra.mxu0 %v1132
    %1267 = vmatprep.subr.mxu0 %v1129
    %1268 = vmatpush1.msra.mxu0 %v1128
    %1269 = vmatprep.subr.mxu0 0.0
    %1270 = vmatpush2.msra.mxu0 0.0
    %1271 = vmatprep.subr.mxu0 0.0
    %1272 = vmatpush2.msra.mxu0 0.0
    %1273 = vmatprep.subr.mxu0 0.0
    %1274 = vmatpush2.msra.mxu0 0.0
    %1275 = vmatprep.subr.mxu0 0.0
    %1276 = vmatpush2.msra.mxu0 0.0
    %1277 = vmatprep.subr.mxu0 0.0
    %1278 = vmatpush2.msra.mxu0 0.0
    %1279 = vmatprep.subr.mxu0 0.0
    %1280 = vmatpush2.msra.mxu0 0.0
    %1281 = vmatprep.subr.mxu0 0.0
    %1282 = vmatpush2.msra.mxu0 0.0
    %1283 = vmatprep.subr.mxu0 0.0
    %1284 = vmatpush2.msra.mxu0 0.0
    %1285 = vmatprep.subr.mxu0 0.0
    %1286 = vmatpush2.msra.mxu0 0.0
    %1287 = vmatprep.subr.mxu0 0.0
    %1288 = vmatpush2.msra.mxu0 0.0
    %1289 = vmatprep.subr.mxu0 0.0
    %1290 = vmatpush2.msra.mxu0 0.0
    %1291 = vmatprep.subr.mxu0 0.0
    %1292 = vmatpush2.msra.mxu0 0.0
    %1293 = vmatprep.subr.mxu0 0.0
    %1294 = vmatpush2.msra.mxu0 0.0
    %1295 = vmatprep.subr.mxu0 0.0
    %1296 = vmatpush2.msra.mxu0 0.0
    %1297 = vmatprep.subr.mxu0 %v1197
    %1298 = vmatpush2.msra.mxu0 %v1196
    %1299 = vmatprep.subr.mxu0 %v1193
    %1300 = vmatpush2.msra.mxu0 %v1192
    %1301 = vmatprep.mubr.f32.mxu0 %v1226
    %1302 = vmatmul.mubr.f32.gmra.mxu0 %v1120
    %v1303 = vpop.f32.mrf.mxu0
    %v1304 = vadd.f32 %v1207, %v1303
    %v1305 = vpop.f32.mrf.mxu0
    %v1306 = vadd.f32 %v1207, %v1305
    %1307 = vmatprep.mubr.f32.mxu0 %v1229
    %1308 = vmatmul.mubr.f32.gmra.mxu0 %v1122
    %v1309 = vpop.f32.mrf.mxu0
    %v1310 = vadd.f32 %v1212, %v1309
    %v1311 = vpop.f32.mrf.mxu0
    %v1312 = vadd.f32 %v1212, %v1311
    %1313 = vmatprep.mubr.f32.mxu0 %v1232
    %1314 = vmatmul.mubr.f32.gmra.mxu0 %v1124
    %v1315 = vpop.f32.mrf.mxu0
    %v1316 = vadd.f32 %v1217, %v1315
    %v1317 = vpop.f32.mrf.mxu0
    %v1318 = vadd.f32 %v1217, %v1317
    %1319 = vmatprep.mubr.f32.mxu0 %v1235
    %1320 = vmatmul.mubr.f32.gmra.mxu0 %v1126
    %v1321 = vpop.f32.mrf.mxu0
    %v1322 = vadd.f32 %v1222, %v1321
    %v1323 = vpop.f32.mrf.mxu0
    %v1324 = vadd.f32 %v1222, %v1323
    %1325 = vdwg.mxu0
    %1326 = vmatprep.subr.mxu0 %v1191
    %1327 = vmatpush1.msra.mxu0 %v1190
    %1328 = vmatprep.subr.mxu0 %v1187
    %1329 = vmatpush1.msra.mxu0 %v1186
    %1330 = vmatprep.subr.mxu0 %v1183
    %1331 = vmatpush1.msra.mxu0 %v1182
    %1332 = vmatprep.subr.mxu0 %v1179
    %1333 = vmatpush1.msra.mxu0 %v1178
    %1334 = vmatprep.subr.mxu0 %v1175
    %1335 = vmatpush1.msra.mxu0 %v1174
    %1336 = vmatprep.subr.mxu0 %v1171
    %1337 = vmatpush1.msra.mxu0 %v1170
    %1338 = vmatprep.subr.mxu0 %v1167
    %1339 = vmatpush1.msra.mxu0 %v1166
    %1340 = vmatprep.subr.mxu0 %v1163
    %1341 = vmatpush1.msra.mxu0 %v1162
    %1342 = vmatprep.subr.mxu0 %v1159
    %1343 = vmatpush1.msra.mxu0 %v1158
    %1344 = vmatprep.subr.mxu0 %v1155
    %1345 = vmatpush1.msra.mxu0 %v1154
    %1346 = vmatprep.subr.mxu0 %v1151
    %1347 = vmatpush1.msra.mxu0 %v1150
    %1348 = vmatprep.subr.mxu0 %v1147
    %1349 = vmatpush1.msra.mxu0 %v1146
    %1350 = vmatprep.subr.mxu0 %v1143
    %1351 = vmatpush1.msra.mxu0 %v1142
    %1352 = vmatprep.subr.mxu0 %v1139
    %1353 = vmatpush1.msra.mxu0 %v1138
    %1354 = vmatprep.subr.mxu0 %v1135
    %1355 = vmatpush1.msra.mxu0 %v1134
    %1356 = vmatprep.subr.mxu0 %v1131
    %1357 = vmatpush1.msra.mxu0 %v1130
    %1358 = vmatprep.subr.mxu0 0.0
    %1359 = vmatpush2.msra.mxu0 0.0
    %1360 = vmatprep.subr.mxu0 0.0
    %1361 = vmatpush2.msra.mxu0 0.0
    %1362 = vmatprep.subr.mxu0 0.0
    %1363 = vmatpush2.msra.mxu0 0.0
    %1364 = vmatprep.subr.mxu0 0.0
    %1365 = vmatpush2.msra.mxu0 0.0
    %1366 = vmatprep.subr.mxu0 0.0
    %1367 = vmatpush2.msra.mxu0 0.0
    %1368 = vmatprep.subr.mxu0 0.0
    %1369 = vmatpush2.msra.mxu0 0.0
    %1370 = vmatprep.subr.mxu0 0.0
    %1371 = vmatpush2.msra.mxu0 0.0
    %1372 = vmatprep.subr.mxu0 0.0
    %1373 = vmatpush2.msra.mxu0 0.0
    %1374 = vmatprep.subr.mxu0 0.0
    %1375 = vmatpush2.msra.mxu0 0.0
    %1376 = vmatprep.subr.mxu0 0.0
    %1377 = vmatpush2.msra.mxu0 0.0
    %1378 = vmatprep.subr.mxu0 0.0
    %1379 = vmatpush2.msra.mxu0 0.0
    %1380 = vmatprep.subr.mxu0 0.0
    %1381 = vmatpush2.msra.mxu0 0.0
    %1382 = vmatprep.subr.mxu0 0.0
    %1383 = vmatpush2.msra.mxu0 0.0
    %1384 = vmatprep.subr.mxu0 0.0
    %1385 = vmatpush2.msra.mxu0 0.0
    %1386 = vmatprep.subr.mxu0 %v1199
    %1387 = vmatpush2.msra.mxu0 %v1198
    %1388 = vmatprep.subr.mxu0 %v1195
    %1389 = vmatpush2.msra.mxu0 %v1194
    %1390 = vmatprep.mubr.f32.mxu0 %v1226
    %1391 = vmatmul.mubr.f32.gmra.mxu0 %v1120
    %v1392 = vpop.f32.mrf.mxu0
    %v1393 = vadd.f32 %v1207, %v1392
    %v1394 = vpop.f32.mrf.mxu0
    %v1395 = vadd.f32 %v1207, %v1394
    %1396 = vmatprep.mubr.f32.mxu0 %v1229
    %1397 = vmatmul.mubr.f32.gmra.mxu0 %v1122
    %v1398 = vpop.f32.mrf.mxu0
    %v1399 = vadd.f32 %v1212, %v1398
    %v1400 = vpop.f32.mrf.mxu0
    %v1401 = vadd.f32 %v1212, %v1400
    %1402 = vmatprep.mubr.f32.mxu0 %v1232
    %1403 = vmatmul.mubr.f32.gmra.mxu0 %v1124
    %v1404 = vpop.f32.mrf.mxu0
    %v1405 = vadd.f32 %v1217, %v1404
    %v1406 = vpop.f32.mrf.mxu0
    %v1407 = vadd.f32 %v1217, %v1406
    %1408 = vmatprep.mubr.f32.mxu0 %v1235
    %1409 = vmatmul.mubr.f32.gmra.mxu0 %v1126
    %v1410 = vpop.f32.mrf.mxu0
    %v1411 = vadd.f32 %v1222, %v1410
    %v1412 = vpop.f32.mrf.mxu0
    %v1413 = vadd.f32 %v1222, %v1412
    %1414 = vdwg.mxu0
    %v1415 = vmax.f32 %v1304, 0.0
    %v1416 = vmax.f32 %v1306, 0.0
    %v1417 = vmax.f32 %v1393, 0.0
    %v1418 = vmax.f32 %v1395, 0.0
    %v1419 = vmax.f32 %v1310, 0.0
    %v1420 = vmax.f32 %v1312, 0.0
    %v1421 = vmax.f32 %v1399, 0.0
    %v1422 = vmax.f32 %v1401, 0.0
    %v1423 = vmax.f32 %v1316, 0.0
    %v1424 = vmax.f32 %v1318, 0.0
    %v1425 = vmax.f32 %v1405, 0.0
    %v1426 = vmax.f32 %v1407, 0.0
    %v1427 = vmax.f32 %v1322, 0.0
    %v1428 = vmax.f32 %v1324, 0.0
    %v1429 = vmax.f32 %v1411, 0.0
    %v1430 = vmax.f32 %v1413, 0.0
    %v1431 = vld [vmem:[%s4] sm:$0xff]
    %v1432 = vld [vmem:[%s4 + $0x8] sm:$0xff]
    %v1433 = vld [vmem:[%s5 + $0x50] sm:$0xff]
    %v1434 = vld [vmem:[%s5 + $0x58] sm:$0xff]
    %1436 = vset.pattern.permute.xlu0 0
    %1437 = vperm.xlu0 %1436, %v1433
    %v1438 = vpop.permute.xlu0 %1437
    %1441 = vset.pattern.permute.xlu0 0
    %1442 = vperm.xlu0 %1441, %v1434
    %v1443 = vpop.permute.xlu0 %1442
    %v1446 = vsel %vm543, %v1431, 0
    %v1449 = vsel %vm543, %v1432, 0
    %1451 = vmatprep.subr.mxu0 0.0
    %1452 = vmatpush1.msra.mxu0 0.0
    %1453 = vmatprep.subr.mxu0 0.0
    %1454 = vmatpush1.msra.mxu0 0.0
    %1455 = vmatprep.subr.mxu0 0.0
    %1456 = vmatpush1.msra.mxu0 0.0
    %1457 = vmatprep.subr.mxu0 0.0
    %1458 = vmatpush1.msra.mxu0 0.0
    %1459 = vmatprep.subr.mxu0 0.0
    %1460 = vmatpush1.msra.mxu0 0.0
    %1461 = vmatprep.subr.mxu0 0.0
    %1462 = vmatpush1.msra.mxu0 0.0
    %1463 = vmatprep.subr.mxu0 0.0
    %1464 = vmatpush1.msra.mxu0 0.0
    %1465 = vmatprep.subr.mxu0 0.0
    %1466 = vmatpush1.msra.mxu0 0.0
    %1467 = vmatprep.subr.mxu0 0.0
    %1468 = vmatpush1.msra.mxu0 0.0
    %1469 = vmatprep.subr.mxu0 0.0
    %1470 = vmatpush1.msra.mxu0 0.0
    %1471 = vmatprep.subr.mxu0 0.0
    %1472 = vmatpush1.msra.mxu0 0.0
    %1473 = vmatprep.subr.mxu0 0.0
    %1474 = vmatpush1.msra.mxu0 0.0
    %1475 = vmatprep.subr.mxu0 %v1428
    %1476 = vmatpush1.msra.mxu0 %v1427
    %1477 = vmatprep.subr.mxu0 %v1424
    %1478 = vmatpush1.msra.mxu0 %v1423
    %1479 = vmatprep.subr.mxu0 %v1420
    %1480 = vmatpush1.msra.mxu0 %v1419
    %1481 = vmatprep.subr.mxu0 %v1416
    %1482 = vmatpush1.msra.mxu0 %v1415
    %1483 = vmatprep.subr.mxu0 0.0
    %1484 = vmatpush2.msra.mxu0 0.0
    %1485 = vmatprep.subr.mxu0 0.0
    %1486 = vmatpush2.msra.mxu0 0.0
    %1487 = vmatprep.subr.mxu0 0.0
    %1488 = vmatpush2.msra.mxu0 0.0
    %1489 = vmatprep.subr.mxu0 0.0
    %1490 = vmatpush2.msra.mxu0 0.0
    %1491 = vmatprep.subr.mxu0 0.0
    %1492 = vmatpush2.msra.mxu0 0.0
    %1493 = vmatprep.subr.mxu0 0.0
    %1494 = vmatpush2.msra.mxu0 0.0
    %1495 = vmatprep.subr.mxu0 0.0
    %1496 = vmatpush2.msra.mxu0 0.0
    %1497 = vmatprep.subr.mxu0 0.0
    %1498 = vmatpush2.msra.mxu0 0.0
    %1499 = vmatprep.subr.mxu0 0.0
    %1500 = vmatpush2.msra.mxu0 0.0
    %1501 = vmatprep.subr.mxu0 0.0
    %1502 = vmatpush2.msra.mxu0 0.0
    %1503 = vmatprep.subr.mxu0 0.0
    %1504 = vmatpush2.msra.mxu0 0.0
    %1505 = vmatprep.subr.mxu0 0.0
    %1506 = vmatpush2.msra.mxu0 0.0
    %1507 = vmatprep.subr.mxu0 0.0
    %1508 = vmatpush2.msra.mxu0 0.0
    %1509 = vmatprep.subr.mxu0 0.0
    %1510 = vmatpush2.msra.mxu0 0.0
    %1511 = vmatprep.subr.mxu0 0.0
    %1512 = vmatpush2.msra.mxu0 0.0
    %1513 = vmatprep.subr.mxu0 0.0
    %1514 = vmatpush2.msra.mxu0 0.0
    %1515 = vmatprep.mubr.f32.mxu0 0.0
    %1516 = vmatmul.mubr.f32.gmra.mxu0 %v1446
    %v1517 = vpop.f32.mrf.mxu0
    %v1518 = vadd.f32 %v1438, %v1517
    %v1519 = vpop.f32.mrf.mxu0
    %v1520 = vadd.f32 %v1438, %v1519
    %1521 = vmatprep.mubr.f32.mxu0 0.0
    %1522 = vmatmul.mubr.f32.gmra.mxu0 %v1449
    %v1523 = vpop.f32.mrf.mxu0
    %v1524 = vadd.f32 %v1443, %v1523
    %v1525 = vpop.f32.mrf.mxu0
    %v1526 = vadd.f32 %v1443, %v1525
    %1527 = vdwg.mxu0
    %1528 = vmatprep.subr.mxu0 0.0
    %1529 = vmatpush1.msra.mxu0 0.0
    %1530 = vmatprep.subr.mxu0 0.0
    %1531 = vmatpush1.msra.mxu0 0.0
    %1532 = vmatprep.subr.mxu0 0.0
    %1533 = vmatpush1.msra.mxu0 0.0
    %1534 = vmatprep.subr.mxu0 0.0
    %1535 = vmatpush1.msra.mxu0 0.0
    %1536 = vmatprep.subr.mxu0 0.0
    %1537 = vmatpush1.msra.mxu0 0.0
    %1538 = vmatprep.subr.mxu0 0.0
    %1539 = vmatpush1.msra.mxu0 0.0
    %1540 = vmatprep.subr.mxu0 0.0
    %1541 = vmatpush1.msra.mxu0 0.0
    %1542 = vmatprep.subr.mxu0 0.0
    %1543 = vmatpush1.msra.mxu0 0.0
    %1544 = vmatprep.subr.mxu0 0.0
    %1545 = vmatpush1.msra.mxu0 0.0
    %1546 = vmatprep.subr.mxu0 0.0
    %1547 = vmatpush1.msra.mxu0 0.0
    %1548 = vmatprep.subr.mxu0 0.0
    %1549 = vmatpush1.msra.mxu0 0.0
    %1550 = vmatprep.subr.mxu0 0.0
    %1551 = vmatpush1.msra.mxu0 0.0
    %1552 = vmatprep.subr.mxu0 %v1430
    %1553 = vmatpush1.msra.mxu0 %v1429
    %1554 = vmatprep.subr.mxu0 %v1426
    %1555 = vmatpush1.msra.mxu0 %v1425
    %1556 = vmatprep.subr.mxu0 %v1422
    %1557 = vmatpush1.msra.mxu0 %v1421
    %1558 = vmatprep.subr.mxu0 %v1418
    %1559 = vmatpush1.msra.mxu0 %v1417
    %1560 = vmatprep.subr.mxu0 0.0
    %1561 = vmatpush2.msra.mxu0 0.0
    %1562 = vmatprep.subr.mxu0 0.0
    %1563 = vmatpush2.msra.mxu0 0.0
    %1564 = vmatprep.subr.mxu0 0.0
    %1565 = vmatpush2.msra.mxu0 0.0
    %1566 = vmatprep.subr.mxu0 0.0
    %1567 = vmatpush2.msra.mxu0 0.0
    %1568 = vmatprep.subr.mxu0 0.0
    %1569 = vmatpush2.msra.mxu0 0.0
    %1570 = vmatprep.subr.mxu0 0.0
    %1571 = vmatpush2.msra.mxu0 0.0
    %1572 = vmatprep.subr.mxu0 0.0
    %1573 = vmatpush2.msra.mxu0 0.0
    %1574 = vmatprep.subr.mxu0 0.0
    %1575 = vmatpush2.msra.mxu0 0.0
    %1576 = vmatprep.subr.mxu0 0.0
    %1577 = vmatpush2.msra.mxu0 0.0
    %1578 = vmatprep.subr.mxu0 0.0
    %1579 = vmatpush2.msra.mxu0 0.0
    %1580 = vmatprep.subr.mxu0 0.0
    %1581 = vmatpush2.msra.mxu0 0.0
    %1582 = vmatprep.subr.mxu0 0.0
    %1583 = vmatpush2.msra.mxu0 0.0
    %1584 = vmatprep.subr.mxu0 0.0
    %1585 = vmatpush2.msra.mxu0 0.0
    %1586 = vmatprep.subr.mxu0 0.0
    %1587 = vmatpush2.msra.mxu0 0.0
    %1588 = vmatprep.subr.mxu0 0.0
    %1589 = vmatpush2.msra.mxu0 0.0
    %1590 = vmatprep.subr.mxu0 0.0
    %1591 = vmatpush2.msra.mxu0 0.0
    %1592 = vmatprep.mubr.f32.mxu0 0.0
    %1593 = vmatmul.mubr.f32.gmra.mxu0 %v1446
    %v1594 = vpop.f32.mrf.mxu0
    %v1595 = vadd.f32 %v1438, %v1594
    %v1596 = vpop.f32.mrf.mxu0
    %v1597 = vadd.f32 %v1438, %v1596
    %1598 = vmatprep.mubr.f32.mxu0 0.0
    %1599 = vmatmul.mubr.f32.gmra.mxu0 %v1449
    %v1600 = vpop.f32.mrf.mxu0
    %v1601 = vadd.f32 %v1443, %v1600
    %v1602 = vpop.f32.mrf.mxu0
    %v1603 = vadd.f32 %v1443, %v1602
    %1604 = vdwg.mxu0
    %1605 = vst [vmem:[%s7] sm:$0xff] %v1518
    %1606 = vst [vmem:[%s7 + $0x8] sm:$0xff] %v1520
    %1607 = vst [vmem:[%s7 + $0x10] sm:$0xff] %v1595
    %1608 = vst [vmem:[%s7 + $0x18] sm:$0xff] %v1597
    %1609 = vst [vmem:[%s7 + $0x20] sm:$0xff] %v1524
    %1610 = vst [vmem:[%s7 + $0x28] sm:$0xff] %v1526
    %1611 = vst [vmem:[%s7 + $0x30] sm:$0xff] %v1601
    %1612 = vst [vmem:[%s7 + $0x38] sm:$0xff] %v1603
    // Predicated region
    $region34: #{forward.1} parent=1 // pred_check
      _
    $region35: #{forward.1} parent=1 // pred_check_branch
      %1614 = sbr.rel (0) target = $region37
    $region36: #{forward.1} parent=1 // pred_region
      _
    $region37: #{forward.1} parent=1 // pred_fallthru
      _
    // Predicated region
    $region38: #{forward.1} parent=1 // pred_check
      _
    $region39: #{forward.1} parent=1 // pred_check_branch
      %1616 = sbr.rel (0) target = $region41
    $region40: #{forward.1} parent=1 // pred_region
      _
    $region41: #{forward.1} parent=1 // pred_fallthru
      _
    %1617 = vsyncpa [#allocation5], 1

</llo_original>
